<compile_context>
chip_gen: v7x
topology: tpu7x:2x2x1
jax: 0.10.0
libtpu: 0.0.40
codegen_flags: <defaults>
</compile_context>

<pallas_src>
import functools

import jax
import jax.numpy as jnp
from jax import lax
from jax.experimental import pallas as pl
from jax.experimental.pallas import tpu as pltpu


_VMEM_LIMIT = 32 * 1024 * 1024
_NQ = 32                      # query/key bottleneck channels of the module


# ----------------------------------------------------------------------------
# helpers
# ----------------------------------------------------------------------------
def _round_up(x, m):
    return ((x + m - 1) // m) * m


def _choose_tile(m, cap=1024):
    """Row tile: multiple of 8, <= cap.  Never falls back to the full extent;
    if no divisor exists the caller pads m up to a multiple of the tile."""
    cap = max(8, cap - cap % 8)
    if m <= cap:
        return _round_up(m, 8)
    for t in range(cap, 7, -8):
        if m % t == 0:
            return t
    return cap


def _mat1x1(wt):
    # PyTorch conv weight (out, in, 1, 1) -> matmul matrix (in, out)
    return jnp.transpose(wt[:, :, 0, 0], (1, 0))


# ----------------------------------------------------------------------------
# Pallas kernels
# ----------------------------------------------------------------------------
def _fusion_ctx_kernel(feat_ref, wqkv_ref, f_ref, qn_ref):
    """Pass A: fused q/k/v projection + per-pixel L2 normalize.  Emits qn for
    pass B and accumulates f = kn^T @ v over the HW tiles of one split."""
    @pl.when(pl.program_id(2) == 0)
    def _():
        f_ref[...] = jnp.zeros_like(f_ref)

    cdt = feat_ref.dtype
    feat = feat_ref[0]                                               # (tm, C)
    qkv = jnp.dot(feat, wqkv_ref[...], preferred_element_type=jnp.float32)
    q = qkv[:, :_NQ]
    k = qkv[:, _NQ:2 * _NQ]
    v = qkv[:, 2 * _NQ:]
    # F.normalize(p=2, eps=1e-12) over the 32-channel axis (rsqrt -> EUP slot).
    qn = q * lax.rsqrt(jnp.maximum(jnp.sum(q * q, axis=1, keepdims=True), 1e-24))
    kn = k * lax.rsqrt(jnp.maximum(jnp.sum(k * k, axis=1, keepdims=True), 1e-24))
    qn_ref[0] = qn.astype(qn_ref.dtype)
    # f += kn^T @ v (contract over the HW-tile axis), f32 accumulation in place.
    f_ref[0, 0] += lax.dot_general(
        kn.astype(cdt), v.astype(cdt),
        (((0,), (0,)), ((), ())), preferred_element_type=jnp.float32)


def _fusion_apply_kernel(*refs, has_up_add, has_up_out):
    """Pass B: p = qn @ fwl + feat [+ up_add]; optionally up = p @ w_up.
    The `up` 1x1 conv and the bilinear residual add are fused so p never takes
    an extra HBM round trip."""
    it = iter(refs)
    qn_ref = next(it)
    feat_ref = next(it)
    fwl_ref = next(it)
    up_add_ref = next(it) if has_up_add else None
    w_up_ref = next(it) if has_up_out else None
    p_ref = next(it)
    up_ref = next(it) if has_up_out else None

    y = jnp.dot(qn_ref[0], fwl_ref[0], preferred_element_type=jnp.float32)
    p = y + feat_ref[0].astype(jnp.float32)                          # (tm, C)
    if has_up_add:
        p = p + up_add_ref[0].astype(jnp.float32)
    p_ref[0] = p.astype(p_ref.dtype)
    if has_up_out:
        up_ref[0] = jnp.dot(p.astype(w_up_ref.dtype), w_up_ref[...],
                            preferred_element_type=jnp.float32).astype(up_ref.dtype)


def _smooth_kernel(xflat_ref, w_ref, o_ref, buf, sem, acc, *, wp, tm, halo, nblk):
    """3x3 conv as 9 statically-offset (tm, C) @ (C, out) matmuls, f32 accum.
    The padded input lives in HBM; each step manually DMAs its (tm + halo) row
    window into a double-buffered VMEM scratch (no halo'd copy in HBM)."""
    step = pl.program_id(0)
    nsteps = pl.num_programs(0)
    slot = step % 2

    def copy(s, dst_slot):
        b = s // nblk
        i = s % nblk
        return pltpu.make_async_copy(
            xflat_ref.at[b, pl.ds(i * tm, tm + halo), :],
            buf.at[dst_slot], sem.at[dst_slot])

    @pl.when(step == 0)
    def _():
        copy(0, 0).start()                      # prime the first window

    @pl.when(step + 1 < nsteps)
    def _():
        copy(step + 1, 1 - slot).start()        # prefetch the next window

    copy(step, slot).wait()

    cur = buf.at[slot]                          # (tm + halo, C) view
    acc[...] = jnp.zeros_like(acc)
    for di in range(3):
        for dj in range(3):
            off = di * wp + dj
            acc[...] += jnp.dot(cur[pl.ds(off, tm), :], w_ref[di * 3 + dj],
                                preferred_element_type=jnp.float32)
    o_ref[0] = acc[...].astype(o_ref.dtype)


# ----------------------------------------------------------------------------
# Pallas wrappers
# ----------------------------------------------------------------------------
def fusion_attention(feat_flat, wqkv, *, tm, kb, nsplit, compute_dtype):
    """Pass A: returns (f_part (N, nsplit, 32, C) f32, qn (N, HW_pad, 32))."""
    n, hw_pad, c = feat_flat.shape
    f_part, qn = pl.pallas_call(
        _fusion_ctx_kernel,
        out_shape=[jax.ShapeDtypeStruct((n, nsplit, _NQ, c), jnp.float32),
                   jax.ShapeDtypeStruct((n, hw_pad, _NQ), compute_dtype)],
        grid=(n, nsplit, kb),
        in_specs=[pl.BlockSpec((1, tm, c), lambda b, s, k: (b, s * kb + k, 0)),
                  pl.BlockSpec(wqkv.shape, lambda b, s, k: (0, 0))],
        out_specs=[pl.BlockSpec((1, 1, _NQ, c), lambda b, s, k: (b, s, 0, 0)),
                   pl.BlockSpec((1, tm, _NQ), lambda b, s, k: (b, s * kb + k, 0))],
        compiler_params=pltpu.CompilerParams(
            dimension_semantics=("parallel", "parallel", "arbitrary"),
            vmem_limit_bytes=_VMEM_LIMIT),
    )(feat_flat, wqkv)
    return f_part, qn


def fusion_apply(qn, feat_flat, fwl, up_add, w_up, *, tm, out_dtype):
    """Pass B: streaming p (+ fused bilinear add) and optionally the up conv."""
    n, hw_pad, c = feat_flat.shape
    nblocks = hw_pad // tm
    has_up_add = up_add is not None
    has_up_out = w_up is not None

    arrays = [qn, feat_flat, fwl]
    in_specs = [pl.BlockSpec((1, tm, _NQ), lambda b, j: (b, j, 0)),
                pl.BlockSpec((1, tm, c), lambda b, j: (b, j, 0)),
                pl.BlockSpec((1, _NQ, c), lambda b, j: (b, 0, 0))]
    if has_up_add:
        arrays.append(up_add)
        in_specs.append(pl.BlockSpec((1, tm, c), lambda b, j: (b, j, 0)))
    if has_up_out:
        arrays.append(w_up)
        in_specs.append(pl.BlockSpec(w_up.shape, lambda b, j: (0, 0)))

    out_shape = [jax.ShapeDtypeStruct((n, hw_pad, c), out_dtype)]
    out_specs = [pl.BlockSpec((1, tm, c), lambda b, j: (b, j, 0))]
    if has_up_out:
        mid = w_up.shape[1]
        out_shape.append(jax.ShapeDtypeStruct((n, hw_pad, mid), out_dtype))
        out_specs.append(pl.BlockSpec((1, tm, mid), lambda b, j: (b, j, 0)))

    outs = pl.pallas_call(
        functools.partial(_fusion_apply_kernel,
                          has_up_add=has_up_add, has_up_out=has_up_out),
        out_shape=out_shape,
        grid=(n, nblocks),
        in_specs=in_specs,
        out_specs=out_specs,
        compiler_params=pltpu.CompilerParams(
            dimension_semantics=("parallel", "parallel"),
            vmem_limit_bytes=_VMEM_LIMIT),
    )(*arrays)
    if not isinstance(outs, (list, tuple)):
        outs = (outs,)
    return outs


def smooth_conv3x3(p_nhwc, w_sm, compute_dtype=jnp.bfloat16):
    """3x3 conv, stride 1, padding 1, no bias, channels-last input.
    The padded input is flattened over (H+2, W+2) rows; each output row of the
    wide (H, W+2) frame accumulates 9 row-shifted taps.  The two garbage
    columns per output row are sliced away at the end."""
    n, h, w, c = p_nhwc.shape
    outc = w_sm.shape[0]
    wp = w + 2
    halo = 2 * wp + 2

    x = p_nhwc.astype(compute_dtype)
    xp = jnp.pad(x, ((0, 0), (1, 1), (1, 1), (0, 0)))                # (N,H+2,W+2,C)
    xflat = xp.reshape(n, (h + 2) * wp, c)

    m = h * wp                                   # "wide" output rows
    tm = _choose_tile(m, cap=512)
    m_pad = _round_up(m, tm)
    nblk = m_pad // tm
    pad_rows = m_pad + halo - xflat.shape[1]
    if pad_rows > 0:
        xflat = jnp.pad(xflat, ((0, 0), (0, pad_rows), (0, 0)))

    # tap (di, dj) weight matrix (C, out); tap index = di*3 + dj
    w_mat = jnp.transpose(w_sm, (2, 3, 1, 0)).reshape(9, c, outc).astype(compute_dtype)

    out_wide = pl.pallas_call(
        functools.partial(_smooth_kernel, wp=wp, tm=tm, halo=halo, nblk=nblk),
        out_shape=jax.ShapeDtypeStruct((n, m_pad, outc), compute_dtype),
        grid=(n * nblk,),
        in_specs=[pl.BlockSpec(memory_space=pl.ANY),                 # stays in HBM
                  pl.BlockSpec((9, c, outc), lambda s: (0, 0, 0))],
        out_specs=pl.BlockSpec((1, tm, outc), lambda s: (s // nblk, s % nblk, 0)),
        scratch_shapes=[pltpu.VMEM((2, tm + halo, c), compute_dtype),
                        pltpu.SemaphoreType.DMA((2,)),
                        pltpu.VMEM((tm, outc), jnp.float32)],
        compiler_params=pltpu.CompilerParams(
            dimension_semantics=("arbitrary",),   # manual cross-step prefetch chain
            vmem_limit_bytes=_VMEM_LIMIT),
    )(xflat, w_mat)

    return out_wide[:, :m, :].reshape(n, h, wp, outc)[:, :, :w, :]   # (N,H,W,out)


# ----------------------------------------------------------------------------
# JAX glue
# ----------------------------------------------------------------------------
def _bilinear_align_corners_nhwc(x, h_out, w_out):
    """F.interpolate(mode='bilinear', align_corners=True).
    # TODO(synk): gather-based bilinear upsample stays in plain JAX glue (no clean Pallas tiling)."""
    n, h_in, w_in, c = x.shape

    def coords(size_in, size_out):
        if size_out == 1 or size_in == 1:
            src = jnp.zeros((size_out,), jnp.float32)
        else:
            src = jnp.linspace(0.0, size_in - 1.0, size_out, dtype=jnp.float32)
        i0 = jnp.clip(jnp.floor(src).astype(jnp.int32), 0, size_in - 1)
        i1 = jnp.clip(i0 + 1, 0, size_in - 1)
        frac = src - i0.astype(jnp.float32)
        return i0, i1, frac

    y0, y1, wy = coords(h_in, h_out)
    x0, x1, wx = coords(w_in, w_out)
    top = x[:, y0, :, :]
    bot = x[:, y1, :, :]
    rows = top * (1.0 - wy)[None, :, None, None] + bot * wy[None, :, None, None]
    left = rows[:, :, x0, :]
    right = rows[:, :, x1, :]
    return left * (1.0 - wx)[None, None, :, None] + right * wx[None, None, :, None]


def la_feature_fusion_forward(params, feat, up_fea_in, up_flag, smf_flag,
                              compute_dtype=jnp.bfloat16):
    """feat: NCHW float32; up_fea_in: NCHW float32 or None."""
    n, c, h, w = feat.shape
    hw = h * w
    # Cast before the NCHW->NHWC transpose (halves the transpose HBM traffic).
    feat_flat = (jnp.transpose(feat.astype(compute_dtype), (0, 2, 3, 1))
                 .reshape(n, hw, c))

    wq = _mat1x1(params["w_qs"]).astype(compute_dtype)
    wk = _mat1x1(params["w_ks"]).astype(compute_dtype)
    wv = _mat1x1(params["w_vs"]).astype(compute_dtype)
    wqkv = jnp.concatenate([wq, wk, wv], axis=1)                     # (C, 64+C)
    wl32 = _mat1x1(params["w_lat"]).astype(jnp.float32)              # tiny, keep f32

    tm = _choose_tile(hw, cap=1024)
    hw_pad = _round_up(hw, tm)
    if hw_pad != hw:
        feat_flat = jnp.pad(feat_flat, ((0, 0), (0, hw_pad - hw), (0, 0)))
    nblocks = hw_pad // tm
    # v7x: 2 TensorCores -> split the HW reduction into 2 partial contexts.
    nsplit = 2 if (nblocks % 2 == 0 and nblocks >= 2) else 1
    kb = nblocks // nsplit

    f_part, qn = fusion_attention(feat_flat, wqkv, tm=tm, kb=kb, nsplit=nsplit,
                                  compute_dtype=compute_dtype)
    f = jnp.sum(f_part, axis=1)                                      # (N, 32, C) f32
    fwl = jnp.einsum("nqc,cd->nqd", f, wl32).astype(compute_dtype)   # fold latlayer3

    up_add = None
    if up_fea_in is not None:
        up_nhwc = _bilinear_align_corners_nhwc(
            jnp.transpose(up_fea_in, (0, 2, 3, 1)), h, w)
        up_add = up_nhwc.astype(compute_dtype).reshape(n, hw, c)
        if hw_pad != hw:
            up_add = jnp.pad(up_add, ((0, 0), (0, hw_pad - hw), (0, 0)))

    w_up = _mat1x1(params["w_up"]).astype(compute_dtype) if up_flag else None

    outs = fusion_apply(qn, feat_flat, fwl, up_add, w_up, tm=tm,
                        out_dtype=compute_dtype)
    p_pad = outs[0]

    up_feat = None
    if up_flag:
        mid = w_up.shape[1]
        up_core = outs[1][:, :hw, :].reshape(n, h, w, mid)
        # `up` is ConvBNReLU(ks=1, padding=1): zero-pad the spatial ring.
        up_core = jnp.pad(up_core.astype(jnp.float32),
                          ((0, 0), (1, 1), (1, 1), (0, 0)))
        up_feat = jnp.transpose(up_core, (0, 3, 1, 2))               # (N,mid,H+2,W+2)

    smooth_feat = None
    if smf_flag:
        p_nhwc = p_pad[:, :hw, :].reshape(n, h, w, c)
        sm = smooth_conv3x3(p_nhwc, params["w_sm"], compute_dtype)
        smooth_feat = jnp.transpose(sm.astype(jnp.float32), (0, 3, 1, 2))

    if up_flag and smf_flag:
        return up_feat, smooth_feat
    if up_flag:
        return up_feat
    if smf_flag:
        return smooth_feat
    return None


# ----------------------------------------------------------------------------
# Deterministic parameter init (kaiming_normal_ with a=1 => std = 1/sqrt(fan_in))
# ----------------------------------------------------------------------------
def init_params(key, in_chan, out_chan):
    mid_chn = in_chan // 2
    keys = jax.random.split(key, 6)

    def kaiming(k, out_c, in_c, kh, kw):
        fan_in = in_c * kh * kw
        std = fan_in ** -0.5
        return std * jax.random.normal(k, (out_c, in_c, kh, kw), jnp.float32)

    return dict(
        w_qs=kaiming(keys[0], 32, in_chan, 1, 1),
        w_ks=kaiming(keys[1], 32, in_chan, 1, 1),
        w_vs=kaiming(keys[2], in_chan, in_chan, 1, 1),
        w_lat=kaiming(keys[3], in_chan, in_chan, 1, 1),
        w_up=kaiming(keys[4], mid_chn, in_chan, 1, 1),
        w_sm=kaiming(keys[5], out_chan, in_chan, 3, 3),
    )


# ----------------------------------------------------------------------------
# Pure-JAX reference (mirrors the PyTorch forward) for validation
# ----------------------------------------------------------------------------
def reference_forward(params, feat, up_fea_in, up_flag, smf_flag):
    n, c, h, w = feat.shape

    def conv1x1(x, wt):
        return jnp.einsum("nchw,oc->nohw", x, wt[:, :, 0, 0])

    query = conv1x1(feat, params["w_qs"]).reshape(n, 32, -1).transpose(0, 2, 1)
    query = query / jnp.maximum(
        jnp.linalg.norm(query, axis=2, keepdims=True), 1e-12)
    key = conv1x1(feat, params["w_ks"]).reshape(n, 32, -1)
    key = key / jnp.maximum(jnp.linalg.norm(key, axis=1, keepdims=True), 1e-12)
    value = conv1x1(feat, params["w_vs"]).reshape(n, c, -1).transpose(0, 2, 1)
    f = jnp.matmul(key, value)
    y = jnp.matmul(query, f).transpose(0, 2, 1).reshape(n, c, h, w)
    p_feat = conv1x1(y, params["w_lat"]) + feat

    if up_fea_in is not None:
        up = jnp.transpose(
            _bilinear_align_corners_nhwc(
                jnp.transpose(up_fea_in, (0, 2, 3, 1)), h, w), (0, 3, 1, 2))
        p_feat = p_feat + up

    def up_branch(p):
        pp = jnp.pad(p, ((0, 0), (0, 0), (1, 1), (1, 1)))
        return jnp.einsum("nchw,oc->nohw", pp, params["w_up"][:, :, 0, 0])

    def smooth_branch(p):
        pp = jnp.pad(p, ((0, 0), (0, 0), (1, 1), (1, 1)))
        return jax.lax.conv_general_dilated(
            pp, params["w_sm"], (1, 1), "VALID",
            dimension_numbers=("NCHW", "OIHW", "NCHW"))

    if up_flag and smf_flag:
        return up_branch(p_feat), smooth_branch(p_feat)
    if up_flag and not smf_flag:
        return up_branch(p_feat)
    if not up_flag and smf_flag:
        return smooth_branch(p_feat)


def _rel_err(got, ref):
    """Max abs error relative to the reference's overall scale (robust to bf16
    rounding on near-zero outputs)."""
    scale = jnp.maximum(jnp.max(jnp.abs(ref)), 1.0)
    return float(jnp.max(jnp.abs(got.astype(jnp.float32) - ref)) / scale)


# ----------------------------------------------------------------------------
if __name__ == "__main__":
    key = jax.random.PRNGKey(0)
    n, in_chan, h, w = 2, 4, 16, 16
    out_chan = 8                       # module default is 128; kept small here

    kp, kf, ku = jax.random.split(key, 3)
    params = init_params(kp, in_chan, out_chan)
    feat = jax.random.normal(kf, (n, in_chan, h, w), jnp.float32)
    up_fea_in = jax.random.normal(ku, (n, in_chan, 8, 8), jnp.float32)

    ref_up, ref_sm = reference_forward(params, feat, up_fea_in, True, True)

    # f32 path: tight check of kernel logic (only reassociation / rsqrt drift).
    up32, sm32 = la_feature_fusion_forward(
        params, feat, up_fea_in, up_flag=True, smf_flag=True,
        compute_dtype=jnp.float32)
    jax.block_until_ready((up32, sm32))
    assert up32.shape == (n, in_chan // 2, h + 2, w + 2), up32.shape
    assert sm32.shape == (n, out_chan, h, w), sm32.shape
    assert _rel_err(up32, ref_up) < 5e-3, _rel_err(up32, ref_up)
    assert _rel_err(sm32, ref_sm) < 5e-3, _rel_err(sm32, ref_sm)

    # bf16 path: the TPU-performance configuration (bf16 MXU inputs, f32 accum).
    up16, sm16 = la_feature_fusion_forward(
        params, feat, up_fea_in, up_flag=True, smf_flag=True,
        compute_dtype=jnp.bfloat16)
    jax.block_until_ready((up16, sm16))
    assert up16.shape == (n, in_chan // 2, h + 2, w + 2), up16.shape
    assert sm16.shape == (n, out_chan, h, w), sm16.shape
    assert _rel_err(up16, ref_up) < 5e-2, _rel_err(up16, ref_up)
    assert _rel_err(sm16, ref_sm) < 5e-2, _rel_err(sm16, ref_sm)

    # single-branch paths (exercise the no-up-add / no-up-out kernel variants)
    up_only = la_feature_fusion_forward(
        params, feat, None, up_flag=True, smf_flag=False,
        compute_dtype=jnp.bfloat16)
    sm_only = la_feature_fusion_forward(
        params, feat, None, up_flag=False, smf_flag=True,
        compute_dtype=jnp.bfloat16)
    jax.block_until_ready((up_only, sm_only))
    ref_up_only = reference_forward(params, feat, None, True, False)
    ref_sm_only = reference_forward(params, feat, None, False, True)
    assert _rel_err(up_only, ref_up_only) < 5e-2, _rel_err(up_only, ref_up_only)
    assert _rel_err(sm_only, ref_sm_only) < 5e-2, _rel_err(sm_only, ref_sm_only)

    print("KERNEL_OK")
</pallas_src>

<mosaic_0001>
module attributes {stable_mosaic.version = 11 : i64} {
  func.func @_fusion_ctx_kernel(%arg0: i32, %arg1: i32, %arg2: i32, %arg3: memref<1x256x4xf32, #tpu.memory_space<vmem>>, %arg4: memref<4x68xf32, #tpu.memory_space<vmem>>, %arg5: memref<1x1x32x4xf32, #tpu.memory_space<vmem>>, %arg6: memref<1x256x32xf32, #tpu.memory_space<vmem>>) attributes {dimension_semantics = [#tpu.dimension_semantics<parallel>, #tpu.dimension_semantics<parallel>, #tpu.dimension_semantics<arbitrary>], iteration_bounds = array<i64: 2, 1, 1>, scalar_prefetch = 0 : i64, scratch_operands = 0 : i64, tpu.core_type = #tpu.core_type<tc>, window_params = [{transform_indices = @transform_0, window_bounds = array<i64: 1, 256, 4>}, {pipeline_mode = #tpu.pipeline_mode<synchronous>, transform_indices = @transform_1, window_bounds = array<i64: 4, 68>}, {transform_indices = @transform_2, window_bounds = array<i64: 1, 1, 32, 4>}, {transform_indices = @transform_3, window_bounds = array<i64: 1, 256, 32>}]} {
    %c0_i32 = arith.constant 0 : i32
    %0 = arith.cmpi eq, %arg2, %c0_i32 : i32
    %1 = arith.extui %0 : i1 to i32
    %c0_i32_0 = arith.constant 0 : i32
    %2 = arith.cmpi ne, %1, %c0_i32_0 : i32
    scf.if %2 {
      %cst_21 = arith.constant 0.000000e+00 : f32
      %36 = vector.broadcast %cst_21 : f32 to vector<1x1x32x4xf32>
      %c0_22 = arith.constant 0 : index
      %c0_23 = arith.constant 0 : index
      %c0_24 = arith.constant 0 : index
      %c0_25 = arith.constant 0 : index
      %37 = vector.load %arg5[%c0_22, %c0_23, %c0_24, %c0_25] : memref<1x1x32x4xf32, #tpu.memory_space<vmem>>, vector<1x1x32x4xf32>
      tpu.vector_store %arg5[%c0_22, %c0_23, %c0_24, %c0_25], %36 {strides = array<i32>} : memref<1x1x32x4xf32, #tpu.memory_space<vmem>>, vector<1x1x32x4xf32>,
    } else {
    }
    %c0 = arith.constant 0 : index
    %c0_1 = arith.constant 0 : index
    %c0_2 = arith.constant 0 : index
    %3 = vector.load %arg3[%c0, %c0_1, %c0_2] : memref<1x256x4xf32, #tpu.memory_space<vmem>>, vector<1x256x4xf32>
    %4 = vector.shape_cast %3 : vector<1x256x4xf32> to vector<256x4xf32>
    %c0_3 = arith.constant 0 : index
    %c0_4 = arith.constant 0 : index
    %5 = vector.load %arg4[%c0_3, %c0_4] : memref<4x68xf32, #tpu.memory_space<vmem>>, vector<4x68xf32>
    %cst = arith.constant dense<0.000000e+00> : vector<256x68xf32>
    %6 = tpu.matmul %4, %5, %cst {dimension_numbers = #tpu.dot_dimension_numbers<[1], [0], [0], [1], [0, 0, 1, 1], [], []>} : vector<256x4xf32>, vector<4x68xf32>, vector<256x68xf32> -> vector<256x68xf32>
    %7 = vector.extract_strided_slice %6 {offsets = [0, 0], sizes = [256, 32], strides = [1, 1]} : vector<256x68xf32> to vector<256x32xf32>
    %8 = vector.extract_strided_slice %6 {offsets = [0, 32], sizes = [256, 32], strides = [1, 1]} : vector<256x68xf32> to vector<256x32xf32>
    %9 = vector.extract_strided_slice %6 {offsets = [0, 64], sizes = [256, 4], strides = [1, 1]} : vector<256x68xf32> to vector<256x4xf32>
    %10 = arith.mulf %7, %7 : vector<256x32xf32>
    %cst_5 = arith.constant dense<0.000000e+00> : vector<256xf32>
    %11 = vector.multi_reduction <add>, %10, %cst_5 [1] : vector<256x32xf32> to vector<256xf32>
    %12 = vector.shape_cast %11 : vector<256xf32> to vector<256x1xf32>
    %cst_6 = arith.constant 1.000000e-24 : f32
    %13 = vector.broadcast %cst_6 : f32 to vector<256x1xf32>
    %14 = arith.maximumf %12, %13 : vector<256x1xf32>
    %15 = math.rsqrt %14 : vector<256x1xf32>
    %16 = vector.broadcast %15 : vector<256x1xf32> to vector<256x32xf32>
    %17 = arith.mulf %7, %16 : vector<256x32xf32>
    %18 = arith.mulf %8, %8 : vector<256x32xf32>
    %cst_7 = arith.constant dense<0.000000e+00> : vector<256xf32>
    %19 = vector.multi_reduction <add>, %18, %cst_7 [1] : vector<256x32xf32> to vector<256xf32>
    %20 = vector.shape_cast %19 : vector<256xf32> to vector<256x1xf32>
    %cst_8 = arith.constant 1.000000e-24 : f32
    %21 = vector.broadcast %cst_8 : f32 to vector<256x1xf32>
    %22 = arith.maximumf %20, %21 : vector<256x1xf32>
    %23 = math.rsqrt %22 : vector<256x1xf32>
    %24 = vector.broadcast %23 : vector<256x1xf32> to vector<256x32xf32>
    %25 = arith.mulf %8, %24 : vector<256x32xf32>
    %c0_9 = arith.constant 0 : index
    %c0_10 = arith.constant 0 : index
    %c0_11 = arith.constant 0 : index
    %26 = vector.load %arg6[%c0_9, %c0_10, %c0_11] : memref<1x256x32xf32, #tpu.memory_space<vmem>>, vector<1x256x32xf32>
    %27 = vector.shape_cast %26 : vector<1x256x32xf32> to vector<256x32xf32>
    %28 = vector.shape_cast %17 : vector<256x32xf32> to vector<1x256x32xf32>
    tpu.vector_store %arg6[%c0_9, %c0_10, %c0_11], %28 {strides = array<i32>} : memref<1x256x32xf32, #tpu.memory_space<vmem>>, vector<1x256x32xf32>,
    %c0_12 = arith.constant 0 : index
    %c0_13 = arith.constant 0 : index
    %c0_14 = arith.constant 0 : index
    %c0_15 = arith.constant 0 : index
    %29 = vector.load %arg5[%c0_12, %c0_13, %c0_14, %c0_15] : memref<1x1x32x4xf32, #tpu.memory_space<vmem>>, vector<1x1x32x4xf32>
    %30 = vector.shape_cast %29 : vector<1x1x32x4xf32> to vector<32x4xf32>
    %cst_16 = arith.constant dense<0.000000e+00> : vector<32x4xf32>
    %31 = tpu.matmul %25, %9, %cst_16 {dimension_numbers = #tpu.dot_dimension_numbers<[0], [0], [1], [1], [0, 1, 1, 1], [], []>} : vector<256x32xf32>, vector<256x4xf32>, vector<32x4xf32> -> vector<32x4xf32>
    %32 = arith.addf %30, %31 : vector<32x4xf32>
    %c0_17 = arith.constant 0 : index
    %c0_18 = arith.constant 0 : index
    %c0_19 = arith.constant 0 : index
    %c0_20 = arith.constant 0 : index
    %33 = vector.load %arg5[%c0_17, %c0_18, %c0_19, %c0_20] : memref<1x1x32x4xf32, #tpu.memory_space<vmem>>, vector<1x1x32x4xf32>
    %34 = vector.shape_cast %33 : vector<1x1x32x4xf32> to vector<32x4xf32>
    %35 = vector.shape_cast %32 : vector<32x4xf32> to vector<1x1x32x4xf32>
    tpu.vector_store %arg5[%c0_17, %c0_18, %c0_19, %c0_20], %35 {strides = array<i32>} : memref<1x1x32x4xf32, #tpu.memory_space<vmem>>, vector<1x1x32x4xf32>,
    return
  }
  func.func @transform_0(%arg0: i32, %arg1: i32, %arg2: i32) -> (i32, i32, i32) {
    %c1_i32 = arith.constant 1 : i32
    %0 = arith.muli %arg1, %c1_i32 : i32
    %1 = arith.addi %0, %arg2 : i32
    %c0_i32 = arith.constant 0 : i32
    %c0_i32_0 = arith.constant 0 : i32
    return %arg0, %1, %c0_i32 : i32, i32, i32
  }
  func.func @transform_1(%arg0: i32, %arg1: i32, %arg2: i32) -> (i32, i32) {
    %c0_i32 = arith.constant 0 : i32
    %c0_i32_0 = arith.constant 0 : i32
    %c0_i32_1 = arith.constant 0 : i32
    return %c0_i32, %c0_i32_0 : i32, i32
  }
  func.func @transform_2(%arg0: i32, %arg1: i32, %arg2: i32) -> (i32, i32, i32, i32) {
    %c0_i32 = arith.constant 0 : i32
    %c0_i32_0 = arith.constant 0 : i32
    %c0_i32_1 = arith.constant 0 : i32
    return %arg0, %arg1, %c0_i32, %c0_i32_0 : i32, i32, i32, i32
  }
  func.func @transform_3(%arg0: i32, %arg1: i32, %arg2: i32) -> (i32, i32, i32) {
    %c1_i32 = arith.constant 1 : i32
    %0 = arith.muli %arg1, %c1_i32 : i32
    %1 = arith.addi %0, %arg2 : i32
    %c0_i32 = arith.constant 0 : i32
    %c0_i32_0 = arith.constant 0 : i32
    return %arg0, %1, %c0_i32 : i32, i32, i32
  }
}

</mosaic_0001>

<llo_original>
// kernel: tpu_custom_call.1
$region0: #{tpu_custom_call.1}
  #allocation0 [shape = 'u32[]', space=smem, size = 0x4, offset = 0x4, fixed_abs, tag = 'smem constant byte address 0x4 - core index']
  #allocation1 [shape = 'u32[144,128]{1,0:T(1,128)}', space=vmem, size = 0x12000, scoped, tag = 'internal scratch']
  %s0 = inlined_call_operand.vmem [shape: f32[2,256,4], index: 0, kind: input, shape index: {}]
  %s1 = inlined_call_operand.vmem [shape: f32[4,68], index: 1, kind: input, shape index: {}]
  %s2 = inlined_call_operand.vmem [shape: f32[2,1,32,4], index: 2, kind: output, shape index: {0}]
  %s3 = inlined_call_operand.vmem [shape: f32[2,256,32], index: 3, kind: output, shape index: {1}]
  %4 = xla_tuple %s2, %s3
  %s5 = sld [smem:[#allocation0]]
  $region53: #{tpu_custom_call.1} parent=0
    _
  %s7 = ssub.s32 1, %s5
  %s8 = scalar_select 0, %s7, %s5
  loop: start=0, step=1, limit=4
  $region2: #{tpu_custom_call.1} parent=0 // loop_pre_header
    _
  $region3: #{tpu_custom_call.1} parent=0 // loop_header
    %s10 = sphi 0, %s14
    %p11 = scmp.ge.s32.totalorder %s10, 4
    %s17 = sphi 0, %s36
    %s18 = sphi 0, %s32
    %s19 = sphi 0, %s28
    %s20 = sphi 0, %s17
    %s21 = sphi 0, %s18
    %s22 = sphi 0, %s19
    %s23 = sphi 0, %s20
    %s24 = sphi 0, %s21
    %s25 = sphi 0, %s22
    %s43 = sphi 0, %s45
    %s46 = sphi 0, %s43
    %s47 = sphi 0, %s46
    %s63 = sphi 0, %s47
    %s67 = sphi 0, %s67
    %s69 = sphi 0, %s67
    %s70 = sphi 0, %s69
    %s84 = sphi 0, %s70
    %s92 = sphi 0, %s94
    %s95 = sphi 0, %s92
    %s96 = sphi 0, %s95
    %s112 = sphi 0, %s96
    %s122 = sphi 0, %s124
    %s125 = sphi 0, %s122
    %s126 = sphi 0, %s125
    %s142 = sphi 0, %s126
  $region4: #{tpu_custom_call.1} parent=0 // loop_header_branch
    %13 = sbr.rel (%p11) target = $region8
  $region5: #{tpu_custom_call.1} parent=0 // loop_body
    %s15 = ssub.s32 %s10, 1
    %s16 = ssub.s32 %s10, 2
    %s26 = sadd.s32 1, %s19
    %p27 = scmp.ge.s32.totalorder %s26, 1
    %s28 = scalar_select %p27, 0, %s26
    %s29 = sadd.s32 1, %s18
    %s30 = scalar_select %p27, %s29, %s18
    %p31 = scmp.ge.s32.totalorder %s30, 1
    %s32 = scalar_select %p31, 0, %s30
    %s33 = sadd.s32 1, %s17
    %s34 = scalar_select %p31, %s33, %s17
    %p35 = scmp.ge.s32.totalorder %s34, 2
    %s36 = scalar_select %p35, 0, %s34
    %s37 = sadd.s32 %s18, %s19
    %s38 = sadd.s32 %s32, %s28
    %s39 = ssub.s32 %s17, %s36
    %s40 = ssub.s32 %s37, %s38
    %s41 = sor.u32 %s39, %s40
    %p42 = scmp.eq.s32.totalorder %s41, 0
    %s44 = sadd.s32 %s43, 1
    %s45 = scalar_select %p42, %s43, %s44
    %p48 = pneg %p42
    %p49 = scmp.eq.s32.totalorder %s10, 1
    %p50 = por %p48, %p49
    %p51 = scmp.ne.s32.totalorder %s43, %s46
    %p52 = scmp.eq.s32.totalorder %s10, 0
    %p53 = por %p51, %p52
    %p54 = scmp.ne.s32.totalorder %s43, %s46
    %p55 = scmp.eq.s32.totalorder %s15, 1
    %p56 = por %p54, %p55
    %p57 = scmp.ne.s32.totalorder %s46, %s47
    %p58 = scmp.eq.s32.totalorder %s15, 0
    %p59 = por %p57, %p58
    %p60 = scmp.ne.s32.totalorder %s46, %s47
    %p61 = scmp.eq.s32.totalorder %s16, 1
    %p62 = por %p60, %p61
    %p64 = scmp.ne.s32.totalorder %s47, %s63
    %p65 = scmp.eq.s32.totalorder %s16, 0
    %p66 = por %p64, %p65
    %s68 = sadd.s32 %s67, 1
    %p71 = scmp.eq.s32.totalorder %s10, 1
    %p72 = scmp.ne.s32.totalorder %s67, %s69
    %p73 = scmp.eq.s32.totalorder %s10, 0
    %p74 = por %p72, %p73
    %p75 = scmp.ne.s32.totalorder %s67, %s69
    %p76 = scmp.eq.s32.totalorder %s15, 1
    %p77 = por %p75, %p76
    %p78 = scmp.ne.s32.totalorder %s69, %s70
    %p79 = scmp.eq.s32.totalorder %s15, 0
    %p80 = por %p78, %p79
    %p81 = scmp.ne.s32.totalorder %s69, %s70
    %p82 = scmp.eq.s32.totalorder %s16, 1
    %p83 = por %p81, %p82
    %p85 = scmp.ne.s32.totalorder %s70, %s84
    %p86 = scmp.eq.s32.totalorder %s16, 0
    %p87 = por %p85, %p86
    %s88 = ssub.s32 %s17, %s36
    %s89 = ssub.s32 %s18, %s32
    %s90 = sor.u32 %s88, %s89
    %p91 = scmp.eq.s32.totalorder %s90, 0
    %s93 = sadd.s32 %s92, 1
    %s94 = scalar_select %p91, %s92, %s93
    %p97 = pneg %p91
    %p98 = scmp.eq.s32.totalorder %s10, 1
    %p99 = por %p97, %p98
    %p100 = scmp.ne.s32.totalorder %s92, %s95
    %p101 = scmp.eq.s32.totalorder %s10, 0
    %p102 = por %p100, %p101
    %p103 = scmp.ne.s32.totalorder %s92, %s95
    %p104 = scmp.eq.s32.totalorder %s15, 1
    %p105 = por %p103, %p104
    %p106 = scmp.ne.s32.totalorder %s95, %s96
    %p107 = scmp.eq.s32.totalorder %s15, 0
    %p108 = por %p106, %p107
    %p109 = scmp.ne.s32.totalorder %s95, %s96
    %p110 = scmp.eq.s32.totalorder %s16, 1
    %p111 = por %p109, %p110
    %p113 = scmp.ne.s32.totalorder %s96, %s112
    %p114 = scmp.eq.s32.totalorder %s16, 0
    %p115 = por %p113, %p114
    %s116 = sadd.s32 %s18, %s19
    %s117 = sadd.s32 %s32, %s28
    %s118 = ssub.s32 %s17, %s36
    %s119 = ssub.s32 %s116, %s117
    %s120 = sor.u32 %s118, %s119
    %p121 = scmp.eq.s32.totalorder %s120, 0
    %s123 = sadd.s32 %s122, 1
    %s124 = scalar_select %p121, %s122, %s123
    %p127 = pneg %p121
    %p128 = scmp.eq.s32.totalorder %s10, 1
    %p129 = por %p127, %p128
    %p130 = scmp.ne.s32.totalorder %s122, %s125
    %p131 = scmp.eq.s32.totalorder %s10, 0
    %p132 = por %p130, %p131
    %p133 = scmp.ne.s32.totalorder %s122, %s125
    %p134 = scmp.eq.s32.totalorder %s15, 1
    %p135 = por %p133, %p134
    %p136 = scmp.ne.s32.totalorder %s125, %s126
    %p137 = scmp.eq.s32.totalorder %s15, 0
    %p138 = por %p136, %p137
    %p139 = scmp.ne.s32.totalorder %s125, %s126
    %p140 = scmp.eq.s32.totalorder %s16, 1
    %p141 = por %p139, %p140
    %p143 = scmp.ne.s32.totalorder %s126, %s142
    %p144 = scmp.eq.s32.totalorder %s16, 0
    %p145 = por %p143, %p144
    %p146 = scmp.le.s32.totalorder 1, %s10
    %p147 = scmp.lt.s32.totalorder %s10, 3
    %p148 = pnand %p146, %p147
    %p149 = pneg %p148
    // Predicated region
    $region9: #{tpu_custom_call.1} parent=5 // pred_check
      _
    $region10: #{tpu_custom_call.1} parent=5 // pred_check_branch
      %151 = sbr.rel (%p148) target = $region12
    $region11: #{tpu_custom_call.1} parent=5 // pred_region
      %s152 = ssub.s32 %s10, 1
      // Predicated region
      $region13: #{tpu_custom_call.1} parent=11 // pred_check
        %p153 = pneg %p80
      $region14: #{tpu_custom_call.1} parent=11 // pred_check_branch
        %155 = sbr.rel (%p153) target = $region16
      $region15: #{tpu_custom_call.1} parent=11 // pred_region
        _
      $region16: #{tpu_custom_call.1} parent=11 // pred_fallthru
        _
    $region12: #{tpu_custom_call.1} parent=5 // pred_fallthru
      _
    %p156 = scmp.lt.s32.totalorder %s10, 2
    // Predicated region
    $region17: #{tpu_custom_call.1} parent=5 // pred_check
      %p157 = pneg %p156
    $region18: #{tpu_custom_call.1} parent=5 // pred_check_branch
      %159 = sbr.rel (%p157) target = $region20
    $region19: #{tpu_custom_call.1} parent=5 // pred_region
      // Predicated region
      $region21: #{tpu_custom_call.1} parent=19 // pred_check
        %p160 = pneg %p53
      $region22: #{tpu_custom_call.1} parent=19 // pred_check_branch
        %162 = sbr.rel (%p160) target = $region24
      $region23: #{tpu_custom_call.1} parent=19 // pred_region
        %s163 = sadd.s32 %s18, %s19
        %s164 = smul.u32 32, %s163
        %p165 = scmp.lt.s32.totalorder %s17, 1
        %s166 = scalar_select %p165, %s17, 1
        %p167 = scmp.lt.s32.totalorder %s164, 31
        %s168 = scalar_select %p167, %s164, 31
        %s169 = smul.addr %s166, 32
        %s170 = sadd.s32 %s168, %s169
        %s171 = smul.addr %s170, 8
        %s172 = scalar_lea.vmem %s0, %s171
        %s173 = sadd.s32 %s18, %s19
        %s174 = smul.u32 32, %s173
      $region24: #{tpu_custom_call.1} parent=19 // pred_fallthru
        _
    $region20: #{tpu_custom_call.1} parent=5 // pred_fallthru
      _
    %p175 = scmp.le.s32.totalorder 1, %s10
    %p176 = scmp.lt.s32.totalorder %s10, 3
    %p177 = pnand %p175, %p176
    %p178 = pneg %p177
    // Predicated region
    $region25: #{tpu_custom_call.1} parent=5 // pred_check
      _
    $region26: #{tpu_custom_call.1} parent=5 // pred_check_branch
      %180 = sbr.rel (%p177) target = $region28
    $region27: #{tpu_custom_call.1} parent=5 // pred_region
      %s181 = ssub.s32 %s10, 1
      %s182 = sadd.s32 %s21, %s22
      %s183 = smul.u32 32, %s182
      %p184 = scmp.lt.s32.totalorder %s20, 1
      %s185 = scalar_select %p184, %s20, 1
      %p186 = scmp.lt.s32.totalorder %s183, 31
      %s187 = scalar_select %p186, %s183, 31
      %s188 = smul.addr %s185, 32
      %s189 = sadd.s32 %s187, %s188
      %s190 = smul.addr %s189, 8
      %s191 = scalar_lea.vmem %s0, %s190
      %p192 = pneg %p59
      %p193 = pneg %p56
      %p194 = pneg %p80
      %p195 = pneg %p77
      %p196 = pneg %p108
      %p197 = pneg %p105
      %p198 = scmp.lt.s32.totalorder %s20, 1
      %s199 = scalar_select %p198, %s20, 1
      %p200 = scmp.lt.s32.totalorder %s21, 0
      %s201 = scalar_select %p200, %s21, 0
      %s202 = smul.addr %s201, 4
      %s203 = smul.addr %s199, 4
      %s204 = sadd.s32 %s202, %s203
      %s205 = smul.addr %s204, 8
      %s206 = scalar_lea.vmem %s2, %s205
      %p207 = pneg %p138
      %p208 = pneg %p135
      %s209 = sadd.s32 %s21, %s22
      %s210 = smul.u32 32, %s209
      %p211 = scmp.lt.s32.totalorder %s20, 1
      %s212 = scalar_select %p211, %s20, 1
      %p213 = scmp.lt.s32.totalorder %s210, 31
      %s214 = scalar_select %p213, %s210, 31
      %s215 = smul.addr %s212, 32
      %s216 = sadd.s32 %s214, %s215
      %s217 = smul.addr %s216, 8
      %s218 = scalar_lea.vmem %s3, %s217
      %s219 = sadd.s32 %s21, %s22
      %s220 = smul.u32 32, %s219
      %p221 = scmp.lt.s32.totalorder %s20, 1
      %s222 = scalar_select %p221, %s20, 1
      %p223 = scmp.lt.s32.totalorder %s220, 31
      %s224 = scalar_select %p223, %s220, 31
      %s225 = smul.addr %s222, 32
      %s226 = sadd.s32 %s224, %s225
      %s227 = smul.addr %s226, 8
      %s228 = scalar_lea.vmem %s0, %s227
      %s229 = sadd.s32 %s21, %s22
      %s230 = smul.u32 32, %s229
      %p231 = scmp.lt.s32.totalorder %s20, 1
      %s232 = scalar_select %p231, %s20, 1
      %p233 = scmp.lt.s32.totalorder %s21, 0
      %s234 = scalar_select %p233, %s21, 0
      %s235 = smul.addr %s234, 4
      %s236 = smul.addr %s232, 4
      %s237 = sadd.s32 %s235, %s236
      %s238 = smul.addr %s237, 8
      %s239 = scalar_lea.vmem %s2, %s238
      %s240 = sadd.s32 %s21, %s22
      %s241 = smul.u32 32, %s240
      %p242 = scmp.lt.s32.totalorder %s20, 1
      %s243 = scalar_select %p242, %s20, 1
      %p244 = scmp.lt.s32.totalorder %s241, 31
      %s245 = scalar_select %p244, %s241, 31
      %s246 = smul.addr %s243, 32
      %s247 = sadd.s32 %s245, %s246
      %s248 = smul.addr %s247, 8
      %s249 = scalar_lea.vmem %s3, %s248
      %s250 = sadd.s32 %s21, %s22
      %s251 = smul.u32 32, %s250
      %p252 = scmp.eq.s32.totalorder %s22, 0
      // Predicated region
      $region29: #{tpu_custom_call.1} parent=27 // pred_check
        %p253 = pneg %p252
      $region30: #{tpu_custom_call.1} parent=27 // pred_check_branch
        %255 = sbr.rel (%p253) target = $region32
      $region31: #{tpu_custom_call.1} parent=27 // pred_region
        %vm256 = vcmask 31744
        %257 = vst.msk [vmem:[%s239] sm:$0xff] %vm256, 0.0
        %258 = vst.msk [vmem:[%s239 + $0x8] sm:$0xff] %vm256, 0.0
        %259 = vst.msk [vmem:[%s239 + $0x10] sm:$0xff] %vm256, 0.0
        %260 = vst.msk [vmem:[%s239 + $0x18] sm:$0xff] %vm256, 0.0
      $region32: #{tpu_custom_call.1} parent=27 // pred_fallthru
        _
      %v261 = vld [vmem:[%s228] sm:$0xff]
      %v262 = vld [vmem:[%s228 + $0x8] sm:$0xff]
      %v263 = vld [vmem:[%s228 + $0x10] sm:$0xff]
      %v264 = vld [vmem:[%s228 + $0x18] sm:$0xff]
      %v265 = vld [vmem:[%s228 + $0x20] sm:$0xff]
      %v266 = vld [vmem:[%s228 + $0x28] sm:$0xff]
      %v267 = vld [vmem:[%s228 + $0x30] sm:$0xff]
      %v268 = vld [vmem:[%s228 + $0x38] sm:$0xff]
      %v269 = vld [vmem:[%s228 + $0x40] sm:$0xff]
      %v270 = vld [vmem:[%s228 + $0x48] sm:$0xff]
      %v271 = vld [vmem:[%s228 + $0x50] sm:$0xff]
      %v272 = vld [vmem:[%s228 + $0x58] sm:$0xff]
      %v273 = vld [vmem:[%s228 + $0x60] sm:$0xff]
      %v274 = vld [vmem:[%s228 + $0x68] sm:$0xff]
      %v275 = vld [vmem:[%s228 + $0x70] sm:$0xff]
      %v276 = vld [vmem:[%s228 + $0x78] sm:$0xff]
      %v277 = vld [vmem:[%s228 + $0x80] sm:$0xff]
      %v278 = vld [vmem:[%s228 + $0x88] sm:$0xff]
      %v279 = vld [vmem:[%s228 + $0x90] sm:$0xff]
      %v280 = vld [vmem:[%s228 + $0x98] sm:$0xff]
      %v281 = vld [vmem:[%s228 + $0xa0] sm:$0xff]
      %v282 = vld [vmem:[%s228 + $0xa8] sm:$0xff]
      %v283 = vld [vmem:[%s228 + $0xb0] sm:$0xff]
      %v284 = vld [vmem:[%s228 + $0xb8] sm:$0xff]
      %v285 = vld [vmem:[%s228 + $0xc0] sm:$0xff]
      %v286 = vld [vmem:[%s228 + $0xc8] sm:$0xff]
      %v287 = vld [vmem:[%s228 + $0xd0] sm:$0xff]
      %v288 = vld [vmem:[%s228 + $0xd8] sm:$0xff]
      %v289 = vld [vmem:[%s228 + $0xe0] sm:$0xff]
      %v290 = vld [vmem:[%s228 + $0xe8] sm:$0xff]
      %v291 = vld [vmem:[%s228 + $0xf0] sm:$0xff]
      %v292 = vld [vmem:[%s228 + $0xf8] sm:$0xff]
      %v293 = vld [vmem:[%s1] sm:$0xf]
      %vm294 = vcmask 31744
      %v296 = vsel %vm294, %v261, 0
      %v299 = vsel %vm294, %v262, 0
      %v302 = vsel %vm294, %v263, 0
      %v305 = vsel %vm294, %v264, 0
      %v308 = vsel %vm294, %v265, 0
      %v311 = vsel %vm294, %v266, 0
      %v314 = vsel %vm294, %v267, 0
      %v317 = vsel %vm294, %v268, 0
      %v320 = vsel %vm294, %v269, 0
      %v323 = vsel %vm294, %v270, 0
      %v326 = vsel %vm294, %v271, 0
      %v329 = vsel %vm294, %v272, 0
      %v332 = vsel %vm294, %v273, 0
      %v335 = vsel %vm294, %v274, 0
      %v338 = vsel %vm294, %v275, 0
      %v341 = vsel %vm294, %v276, 0
      %v344 = vsel %vm294, %v277, 0
      %v347 = vsel %vm294, %v278, 0
      %v350 = vsel %vm294, %v279, 0
      %v353 = vsel %vm294, %v280, 0
      %v356 = vsel %vm294, %v281, 0
      %v359 = vsel %vm294, %v282, 0
      %v362 = vsel %vm294, %v283, 0
      %v365 = vsel %vm294, %v284, 0
      %v368 = vsel %vm294, %v285, 0
      %v371 = vsel %vm294, %v286, 0
      %v374 = vsel %vm294, %v287, 0
      %v377 = vsel %vm294, %v288, 0
      %v380 = vsel %vm294, %v289, 0
      %v383 = vsel %vm294, %v290, 0
      %v386 = vsel %vm294, %v291, 0
      %v389 = vsel %vm294, %v292, 0
      %vm391 = vcmask 1043456
      %v393 = vsel %vm391, %v293, 0
      %395 = vmatprep.subr.mxu0 0.0
      %396 = vmatpush1.msra.mxu0 %v393
      %397 = vmatprep.subr.mxu0 0.0
      %398 = vmatpush1.msra.mxu0 0.0
      %399 = vmatprep.subr.mxu0 0.0
      %400 = vmatpush1.msra.mxu0 0.0
      %401 = vmatprep.subr.mxu0 0.0
      %402 = vmatpush1.msra.mxu0 0.0
      %403 = vmatprep.subr.mxu0 0.0
      %404 = vmatpush1.msra.mxu0 0.0
      %405 = vmatprep.subr.mxu0 0.0
      %406 = vmatpush1.msra.mxu0 0.0
      %407 = vmatprep.subr.mxu0 0.0
      %408 = vmatpush1.msra.mxu0 0.0
      %409 = vmatprep.subr.mxu0 0.0
      %410 = vmatpush1.msra.mxu0 0.0
      %411 = vmatprep.subr.mxu0 0.0
      %412 = vmatpush1.msra.mxu0 0.0
      %413 = vmatprep.subr.mxu0 0.0
      %414 = vmatpush1.msra.mxu0 0.0
      %415 = vmatprep.subr.mxu0 0.0
      %416 = vmatpush1.msra.mxu0 0.0
      %417 = vmatprep.subr.mxu0 0.0
      %418 = vmatpush1.msra.mxu0 0.0
      %419 = vmatprep.subr.mxu0 0.0
      %420 = vmatpush1.msra.mxu0 0.0
      %421 = vmatprep.subr.mxu0 0.0
      %422 = vmatpush1.msra.mxu0 0.0
      %423 = vmatprep.subr.mxu0 0.0
      %424 = vmatpush1.msra.mxu0 0.0
      %425 = vmatprep.subr.mxu0 0.0
      %426 = vmatpush1.msra.mxu0 0.0
      %427 = vmatprep.subr.mxu0 0.0
      %428 = vmatpush1.msra.mxu0 0.0
      %429 = vmatprep.subr.mxu0 0.0
      %430 = vmatpush1.msra.mxu0 0.0
      %431 = vmatprep.subr.mxu0 0.0
      %432 = vmatpush1.msra.mxu0 0.0
      %433 = vmatprep.subr.mxu0 0.0
      %434 = vmatpush1.msra.mxu0 0.0
      %435 = vmatprep.subr.mxu0 0.0
      %436 = vmatpush1.msra.mxu0 0.0
      %437 = vmatprep.subr.mxu0 0.0
      %438 = vmatpush1.msra.mxu0 0.0
      %439 = vmatprep.subr.mxu0 0.0
      %440 = vmatpush1.msra.mxu0 0.0
      %441 = vmatprep.subr.mxu0 0.0
      %442 = vmatpush1.msra.mxu0 0.0
      %443 = vmatprep.subr.mxu0 0.0
      %444 = vmatpush1.msra.mxu0 0.0
      %445 = vmatprep.subr.mxu0 0.0
      %446 = vmatpush1.msra.mxu0 0.0
      %447 = vmatprep.subr.mxu0 0.0
      %448 = vmatpush1.msra.mxu0 0.0
      %449 = vmatprep.subr.mxu0 0.0
      %450 = vmatpush1.msra.mxu0 0.0
      %451 = vmatprep.subr.mxu0 0.0
      %452 = vmatpush1.msra.mxu0 0.0
      %453 = vmatprep.subr.mxu0 0.0
      %454 = vmatpush1.msra.mxu0 0.0
      %455 = vmatprep.subr.mxu0 0.0
      %456 = vmatpush1.msra.mxu0 0.0
      %457 = vmatprep.subr.mxu0 0.0
      %458 = vmatpush1.msra.mxu0 0.0
      %459 = vmatprep.mubr.f32.mxu0 0.0
      %460 = vmatmul.mubr.f32.gmra.mrb[0].mxu0 %v296
      %v461 = vpop.f32.mrb[0].mxu0
      %v462 = vadd.f32 0.0, %v461
      %v463 = vpop.f32.mrb[0].mxu0
      %464 = vmatprep.mubr.f32.mxu0 0.0
      %465 = vmatmul.mubr.f32.gmra.mrb[0].mxu0 %v299
      %v466 = vpop.f32.mrb[0].mxu0
      %v467 = vadd.f32 0.0, %v466
      %v468 = vpop.f32.mrb[0].mxu0
      %469 = vmatprep.mubr.f32.mxu0 0.0
      %470 = vmatmul.mubr.f32.gmra.mrb[0].mxu0 %v302
      %v471 = vpop.f32.mrb[0].mxu0
      %v472 = vadd.f32 0.0, %v471
      %v473 = vpop.f32.mrb[0].mxu0
      %474 = vmatprep.mubr.f32.mxu0 0.0
      %475 = vmatmul.mubr.f32.gmra.mrb[0].mxu0 %v305
      %v476 = vpop.f32.mrb[0].mxu0
      %v477 = vadd.f32 0.0, %v476
      %v478 = vpop.f32.mrb[0].mxu0
      %479 = vmatprep.mubr.f32.mxu0 0.0
      %480 = vmatmul.mubr.f32.gmra.mrb[0].mxu0 %v308
      %v481 = vpop.f32.mrb[0].mxu0
      %v482 = vadd.f32 0.0, %v481
      %v483 = vpop.f32.mrb[0].mxu0
      %484 = vmatprep.mubr.f32.mxu0 0.0
      %485 = vmatmul.mubr.f32.gmra.mrb[0].mxu0 %v311
      %v486 = vpop.f32.mrb[0].mxu0
      %v487 = vadd.f32 0.0, %v486
      %v488 = vpop.f32.mrb[0].mxu0
      %489 = vmatprep.mubr.f32.mxu0 0.0
      %490 = vmatmul.mubr.f32.gmra.mrb[0].mxu0 %v314
      %v491 = vpop.f32.mrb[0].mxu0
      %v492 = vadd.f32 0.0, %v491
      %v493 = vpop.f32.mrb[0].mxu0
      %494 = vmatprep.mubr.f32.mxu0 0.0
      %495 = vmatmul.mubr.f32.gmra.mrb[0].mxu0 %v317
      %v496 = vpop.f32.mrb[0].mxu0
      %v497 = vadd.f32 0.0, %v496
      %v498 = vpop.f32.mrb[0].mxu0
      %499 = vmatprep.mubr.f32.mxu0 0.0
      %500 = vmatmul.mubr.f32.gmra.mrb[0].mxu0 %v320
      %v501 = vpop.f32.mrb[0].mxu0
      %v502 = vadd.f32 0.0, %v501
      %v503 = vpop.f32.mrb[0].mxu0
      %504 = vmatprep.mubr.f32.mxu0 0.0
      %505 = vmatmul.mubr.f32.gmra.mrb[0].mxu0 %v323
      %v506 = vpop.f32.mrb[0].mxu0
      %v507 = vadd.f32 0.0, %v506
      %v508 = vpop.f32.mrb[0].mxu0
      %509 = vmatprep.mubr.f32.mxu0 0.0
      %510 = vmatmul.mubr.f32.gmra.mrb[0].mxu0 %v326
      %v511 = vpop.f32.mrb[0].mxu0
      %v512 = vadd.f32 0.0, %v511
      %v513 = vpop.f32.mrb[0].mxu0
      %514 = vmatprep.mubr.f32.mxu0 0.0
      %515 = vmatmul.mubr.f32.gmra.mrb[0].mxu0 %v329
      %v516 = vpop.f32.mrb[0].mxu0
      %v517 = vadd.f32 0.0, %v516
      %v518 = vpop.f32.mrb[0].mxu0
      %519 = vmatprep.mubr.f32.mxu0 0.0
      %520 = vmatmul.mubr.f32.gmra.mrb[0].mxu0 %v332
      %v521 = vpop.f32.mrb[0].mxu0
      %v522 = vadd.f32 0.0, %v521
      %v523 = vpop.f32.mrb[0].mxu0
      %524 = vmatprep.mubr.f32.mxu0 0.0
      %525 = vmatmul.mubr.f32.gmra.mrb[0].mxu0 %v335
      %v526 = vpop.f32.mrb[0].mxu0
      %v527 = vadd.f32 0.0, %v526
      %v528 = vpop.f32.mrb[0].mxu0
      %529 = vmatprep.mubr.f32.mxu0 0.0
      %530 = vmatmul.mubr.f32.gmra.mrb[0].mxu0 %v338
      %v531 = vpop.f32.mrb[0].mxu0
      %v532 = vadd.f32 0.0, %v531
      %v533 = vpop.f32.mrb[0].mxu0
      %534 = vmatprep.mubr.f32.mxu0 0.0
      %535 = vmatmul.mubr.f32.gmra.mrb[0].mxu0 %v341
      %v536 = vpop.f32.mrb[0].mxu0
      %v537 = vadd.f32 0.0, %v536
      %v538 = vpop.f32.mrb[0].mxu0
      %539 = vmatprep.mubr.f32.mxu0 0.0
      %540 = vmatmul.mubr.f32.gmra.mrb[0].mxu0 %v344
      %v541 = vpop.f32.mrb[0].mxu0
      %v542 = vadd.f32 0.0, %v541
      %v543 = vpop.f32.mrb[0].mxu0
      %544 = vmatprep.mubr.f32.mxu0 0.0
      %545 = vmatmul.mubr.f32.gmra.mrb[0].mxu0 %v347
      %v546 = vpop.f32.mrb[0].mxu0
      %v547 = vadd.f32 0.0, %v546
      %v548 = vpop.f32.mrb[0].mxu0
      %549 = vmatprep.mubr.f32.mxu0 0.0
      %550 = vmatmul.mubr.f32.gmra.mrb[0].mxu0 %v350
      %v551 = vpop.f32.mrb[0].mxu0
      %v552 = vadd.f32 0.0, %v551
      %v553 = vpop.f32.mrb[0].mxu0
      %554 = vmatprep.mubr.f32.mxu0 0.0
      %555 = vmatmul.mubr.f32.gmra.mrb[0].mxu0 %v353
      %v556 = vpop.f32.mrb[0].mxu0
      %v557 = vadd.f32 0.0, %v556
      %v558 = vpop.f32.mrb[0].mxu0
      %559 = vmatprep.mubr.f32.mxu0 0.0
      %560 = vmatmul.mubr.f32.gmra.mrb[0].mxu0 %v356
      %v561 = vpop.f32.mrb[0].mxu0
      %v562 = vadd.f32 0.0, %v561
      %v563 = vpop.f32.mrb[0].mxu0
      %564 = vmatprep.mubr.f32.mxu0 0.0
      %565 = vmatmul.mubr.f32.gmra.mrb[0].mxu0 %v359
      %v566 = vpop.f32.mrb[0].mxu0
      %v567 = vadd.f32 0.0, %v566
      %v568 = vpop.f32.mrb[0].mxu0
      %569 = vmatprep.mubr.f32.mxu0 0.0
      %570 = vmatmul.mubr.f32.gmra.mrb[0].mxu0 %v362
      %v571 = vpop.f32.mrb[0].mxu0
      %v572 = vadd.f32 0.0, %v571
      %v573 = vpop.f32.mrb[0].mxu0
      %574 = vmatprep.mubr.f32.mxu0 0.0
      %575 = vmatmul.mubr.f32.gmra.mrb[0].mxu0 %v365
      %v576 = vpop.f32.mrb[0].mxu0
      %v577 = vadd.f32 0.0, %v576
      %v578 = vpop.f32.mrb[0].mxu0
      %579 = vmatprep.mubr.f32.mxu0 0.0
      %580 = vmatmul.mubr.f32.gmra.mrb[0].mxu0 %v368
      %v581 = vpop.f32.mrb[0].mxu0
      %v582 = vadd.f32 0.0, %v581
      %v583 = vpop.f32.mrb[0].mxu0
      %584 = vmatprep.mubr.f32.mxu0 0.0
      %585 = vmatmul.mubr.f32.gmra.mrb[0].mxu0 %v371
      %v586 = vpop.f32.mrb[0].mxu0
      %v587 = vadd.f32 0.0, %v586
      %v588 = vpop.f32.mrb[0].mxu0
      %589 = vmatprep.mubr.f32.mxu0 0.0
      %590 = vmatmul.mubr.f32.gmra.mrb[0].mxu0 %v374
      %v591 = vpop.f32.mrb[0].mxu0
      %v592 = vadd.f32 0.0, %v591
      %v593 = vpop.f32.mrb[0].mxu0
      %594 = vmatprep.mubr.f32.mxu0 0.0
      %595 = vmatmul.mubr.f32.gmra.mrb[0].mxu0 %v377
      %v596 = vpop.f32.mrb[0].mxu0
      %v597 = vadd.f32 0.0, %v596
      %v598 = vpop.f32.mrb[0].mxu0
      %599 = vmatprep.mubr.f32.mxu0 0.0
      %600 = vmatmul.mubr.f32.gmra.mrb[0].mxu0 %v380
      %v601 = vpop.f32.mrb[0].mxu0
      %v602 = vadd.f32 0.0, %v601
      %v603 = vpop.f32.mrb[0].mxu0
      %604 = vmatprep.mubr.f32.mxu0 0.0
      %605 = vmatmul.mubr.f32.gmra.mrb[0].mxu0 %v383
      %v606 = vpop.f32.mrb[0].mxu0
      %v607 = vadd.f32 0.0, %v606
      %v608 = vpop.f32.mrb[0].mxu0
      %609 = vmatprep.mubr.f32.mxu0 0.0
      %610 = vmatmul.mubr.f32.gmra.mrb[0].mxu0 %v386
      %v611 = vpop.f32.mrb[0].mxu0
      %v612 = vadd.f32 0.0, %v611
      %v613 = vpop.f32.mrb[0].mxu0
      %614 = vmatprep.mubr.f32.mxu0 0.0
      %615 = vmatmul.mubr.f32.gmra.mrb[0].mxu0 %v389
      %v616 = vpop.f32.mrb[0].mxu0
      %v617 = vadd.f32 0.0, %v616
      %v618 = vpop.f32.mrb[0].mxu0
      %619 = vdwg.mxu0
      %v620 = vmul.f32 %v462, %v462
      %v621 = vmul.f32 %v467, %v467
      %v622 = vmul.f32 %v472, %v472
      %v623 = vmul.f32 %v477, %v477
      %v624 = vmul.f32 %v482, %v482
      %v625 = vmul.f32 %v487, %v487
      %v626 = vmul.f32 %v492, %v492
      %v627 = vmul.f32 %v497, %v497
      %v628 = vmul.f32 %v502, %v502
      %v629 = vmul.f32 %v507, %v507
      %v630 = vmul.f32 %v512, %v512
      %v631 = vmul.f32 %v517, %v517
      %v632 = vmul.f32 %v522, %v522
      %v633 = vmul.f32 %v527, %v527
      %v634 = vmul.f32 %v532, %v532
      %v635 = vmul.f32 %v537, %v537
      %v636 = vmul.f32 %v542, %v542
      %v637 = vmul.f32 %v547, %v547
      %v638 = vmul.f32 %v552, %v552
      %v639 = vmul.f32 %v557, %v557
      %v640 = vmul.f32 %v562, %v562
      %v641 = vmul.f32 %v567, %v567
      %v642 = vmul.f32 %v572, %v572
      %v643 = vmul.f32 %v577, %v577
      %v644 = vmul.f32 %v582, %v582
      %v645 = vmul.f32 %v587, %v587
      %v646 = vmul.f32 %v592, %v592
      %v647 = vmul.f32 %v597, %v597
      %v648 = vmul.f32 %v602, %v602
      %v649 = vmul.f32 %v607, %v607
      %v650 = vmul.f32 %v612, %v612
      %v651 = vmul.f32 %v617, %v617
      %vm652 = vcmask 261120
      %v653 = vsel %vm652, %v620, 0.0
      %654 = vadd.xlane.f32.xlu0 %v653
      %v655 = vpop.xlane.xlu0 %654
      %v656 = vsel %vm652, %v621, 0.0
      %657 = vadd.xlane.f32.xlu0 %v656
      %v658 = vpop.xlane.xlu0 %657
      %v659 = vsel %vm652, %v622, 0.0
      %660 = vadd.xlane.f32.xlu0 %v659
      %v661 = vpop.xlane.xlu0 %660
      %v662 = vsel %vm652, %v623, 0.0
      %663 = vadd.xlane.f32.xlu0 %v662
      %v664 = vpop.xlane.xlu0 %663
      %v665 = vsel %vm652, %v624, 0.0
      %666 = vadd.xlane.f32.xlu0 %v665
      %v667 = vpop.xlane.xlu0 %666
      %v668 = vsel %vm652, %v625, 0.0
      %669 = vadd.xlane.f32.xlu0 %v668
      %v670 = vpop.xlane.xlu0 %669
      %v671 = vsel %vm652, %v626, 0.0
      %672 = vadd.xlane.f32.xlu0 %v671
      %v673 = vpop.xlane.xlu0 %672
      %v674 = vsel %vm652, %v627, 0.0
      %675 = vadd.xlane.f32.xlu0 %v674
      %v676 = vpop.xlane.xlu0 %675
      %v677 = vsel %vm652, %v628, 0.0
      %678 = vadd.xlane.f32.xlu0 %v677
      %v679 = vpop.xlane.xlu0 %678
      %v680 = vsel %vm652, %v629, 0.0
      %681 = vadd.xlane.f32.xlu0 %v680
      %v682 = vpop.xlane.xlu0 %681
      %v683 = vsel %vm652, %v630, 0.0
      %684 = vadd.xlane.f32.xlu0 %v683
      %v685 = vpop.xlane.xlu0 %684
      %v686 = vsel %vm652, %v631, 0.0
      %687 = vadd.xlane.f32.xlu0 %v686
      %v688 = vpop.xlane.xlu0 %687
      %v689 = vsel %vm652, %v632, 0.0
      %690 = vadd.xlane.f32.xlu0 %v689
      %v691 = vpop.xlane.xlu0 %690
      %v692 = vsel %vm652, %v633, 0.0
      %693 = vadd.xlane.f32.xlu0 %v692
      %v694 = vpop.xlane.xlu0 %693
      %v695 = vsel %vm652, %v634, 0.0
      %696 = vadd.xlane.f32.xlu0 %v695
      %v697 = vpop.xlane.xlu0 %696
      %v698 = vsel %vm652, %v635, 0.0
      %699 = vadd.xlane.f32.xlu0 %v698
      %v700 = vpop.xlane.xlu0 %699
      %v701 = vsel %vm652, %v636, 0.0
      %702 = vadd.xlane.f32.xlu0 %v701
      %v703 = vpop.xlane.xlu0 %702
      %v704 = vsel %vm652, %v637, 0.0
      %705 = vadd.xlane.f32.xlu0 %v704
      %v706 = vpop.xlane.xlu0 %705
      %v707 = vsel %vm652, %v638, 0.0
      %708 = vadd.xlane.f32.xlu0 %v707
      %v709 = vpop.xlane.xlu0 %708
      %v710 = vsel %vm652, %v639, 0.0
      %711 = vadd.xlane.f32.xlu0 %v710
      %v712 = vpop.xlane.xlu0 %711
      %v713 = vsel %vm652, %v640, 0.0
      %714 = vadd.xlane.f32.xlu0 %v713
      %v715 = vpop.xlane.xlu0 %714
      %v716 = vsel %vm652, %v641, 0.0
      %717 = vadd.xlane.f32.xlu0 %v716
      %v718 = vpop.xlane.xlu0 %717
      %v719 = vsel %vm652, %v642, 0.0
      %720 = vadd.xlane.f32.xlu0 %v719
      %v721 = vpop.xlane.xlu0 %720
      %v722 = vsel %vm652, %v643, 0.0
      %723 = vadd.xlane.f32.xlu0 %v722
      %v724 = vpop.xlane.xlu0 %723
      %v725 = vsel %vm652, %v644, 0.0
      %726 = vadd.xlane.f32.xlu0 %v725
      %v727 = vpop.xlane.xlu0 %726
      %v728 = vsel %vm652, %v645, 0.0
      %729 = vadd.xlane.f32.xlu0 %v728
      %v730 = vpop.xlane.xlu0 %729
      %v731 = vsel %vm652, %v646, 0.0
      %732 = vadd.xlane.f32.xlu0 %v731
      %v733 = vpop.xlane.xlu0 %732
      %v734 = vsel %vm652, %v647, 0.0
      %735 = vadd.xlane.f32.xlu0 %v734
      %v736 = vpop.xlane.xlu0 %735
      %v737 = vsel %vm652, %v648, 0.0
      %738 = vadd.xlane.f32.xlu0 %v737
      %v739 = vpop.xlane.xlu0 %738
      %v740 = vsel %vm652, %v649, 0.0
      %741 = vadd.xlane.f32.xlu0 %v740
      %v742 = vpop.xlane.xlu0 %741
      %v743 = vsel %vm652, %v650, 0.0
      %744 = vadd.xlane.f32.xlu0 %v743
      %v745 = vpop.xlane.xlu0 %744
      %v746 = vsel %vm652, %v651, 0.0
      %747 = vadd.xlane.f32.xlu0 %v746
      %v748 = vpop.xlane.xlu0 %747
      %v749 = vmax.f32 %v655, 1e-24
      %v750 = vmax.f32 %v658, 1e-24
      %v751 = vmax.f32 %v661, 1e-24
      %v752 = vmax.f32 %v664, 1e-24
      %v753 = vmax.f32 %v667, 1e-24
      %v754 = vmax.f32 %v670, 1e-24
      %v755 = vmax.f32 %v673, 1e-24
      %v756 = vmax.f32 %v676, 1e-24
      %v757 = vmax.f32 %v679, 1e-24
      %v758 = vmax.f32 %v682, 1e-24
      %v759 = vmax.f32 %v685, 1e-24
      %v760 = vmax.f32 %v688, 1e-24
      %v761 = vmax.f32 %v691, 1e-24
      %v762 = vmax.f32 %v694, 1e-24
      %v763 = vmax.f32 %v697, 1e-24
      %v764 = vmax.f32 %v700, 1e-24
      %v765 = vmax.f32 %v703, 1e-24
      %v766 = vmax.f32 %v706, 1e-24
      %v767 = vmax.f32 %v709, 1e-24
      %v768 = vmax.f32 %v712, 1e-24
      %v769 = vmax.f32 %v715, 1e-24
      %v770 = vmax.f32 %v718, 1e-24
      %v771 = vmax.f32 %v721, 1e-24
      %v772 = vmax.f32 %v724, 1e-24
      %v773 = vmax.f32 %v727, 1e-24
      %v774 = vmax.f32 %v730, 1e-24
      %v775 = vmax.f32 %v733, 1e-24
      %v776 = vmax.f32 %v736, 1e-24
      %v777 = vmax.f32 %v739, 1e-24
      %v778 = vmax.f32 %v742, 1e-24
      %v779 = vmax.f32 %v745, 1e-24
      %v780 = vmax.f32 %v748, 1e-24
      %v781 = vrsqrt.pop %v749
      %v782 = vrsqrt.pop %v750
      %v783 = vrsqrt.pop %v751
      %v784 = vrsqrt.pop %v752
      %v785 = vrsqrt.pop %v753
      %v786 = vrsqrt.pop %v754
      %v787 = vrsqrt.pop %v755
      %v788 = vrsqrt.pop %v756
      %v789 = vrsqrt.pop %v757
      %v790 = vrsqrt.pop %v758
      %v791 = vrsqrt.pop %v759
      %v792 = vrsqrt.pop %v760
      %v793 = vrsqrt.pop %v761
      %v794 = vrsqrt.pop %v762
      %v795 = vrsqrt.pop %v763
      %v796 = vrsqrt.pop %v764
      %v797 = vrsqrt.pop %v765
      %v798 = vrsqrt.pop %v766
      %v799 = vrsqrt.pop %v767
      %v800 = vrsqrt.pop %v768
      %v801 = vrsqrt.pop %v769
      %v802 = vrsqrt.pop %v770
      %v803 = vrsqrt.pop %v771
      %v804 = vrsqrt.pop %v772
      %v805 = vrsqrt.pop %v773
      %v806 = vrsqrt.pop %v774
      %v807 = vrsqrt.pop %v775
      %v808 = vrsqrt.pop %v776
      %v809 = vrsqrt.pop %v777
      %v810 = vrsqrt.pop %v778
      %v811 = vrsqrt.pop %v779
      %v812 = vrsqrt.pop %v780
      %v813 = vmul.f32 %v462, %v781
      %v814 = vmul.f32 %v467, %v782
      %v815 = vmul.f32 %v472, %v783
      %v816 = vmul.f32 %v477, %v784
      %v817 = vmul.f32 %v482, %v785
      %v818 = vmul.f32 %v487, %v786
      %v819 = vmul.f32 %v492, %v787
      %v820 = vmul.f32 %v497, %v788
      %v821 = vmul.f32 %v502, %v789
      %v822 = vmul.f32 %v507, %v790
      %v823 = vmul.f32 %v512, %v791
      %v824 = vmul.f32 %v517, %v792
      %v825 = vmul.f32 %v522, %v793
      %v826 = vmul.f32 %v527, %v794
      %v827 = vmul.f32 %v532, %v795
      %v828 = vmul.f32 %v537, %v796
      %v829 = vmul.f32 %v542, %v797
      %v830 = vmul.f32 %v547, %v798
      %v831 = vmul.f32 %v552, %v799
      %v832 = vmul.f32 %v557, %v800
      %v833 = vmul.f32 %v562, %v801
      %v834 = vmul.f32 %v567, %v802
      %v835 = vmul.f32 %v572, %v803
      %v836 = vmul.f32 %v577, %v804
      %v837 = vmul.f32 %v582, %v805
      %v838 = vmul.f32 %v587, %v806
      %v839 = vmul.f32 %v592, %v807
      %v840 = vmul.f32 %v597, %v808
      %v841 = vmul.f32 %v602, %v809
      %v842 = vmul.f32 %v607, %v810
      %v843 = vmul.f32 %v612, %v811
      %v844 = vmul.f32 %v617, %v812
      %877 = vrot.lane.b32.xlu0 %v620, 96
      %v878 = vpop.permute.xlu0 %877
      %879 = vrot.lane.b32.xlu0 %v621, 96
      %v880 = vpop.permute.xlu0 %879
      %881 = vrot.lane.b32.xlu0 %v622, 96
      %v882 = vpop.permute.xlu0 %881
      %883 = vrot.lane.b32.xlu0 %v623, 96
      %v884 = vpop.permute.xlu0 %883
      %885 = vrot.lane.b32.xlu0 %v624, 96
      %v886 = vpop.permute.xlu0 %885
      %887 = vrot.lane.b32.xlu0 %v625, 96
      %v888 = vpop.permute.xlu0 %887
      %889 = vrot.lane.b32.xlu0 %v626, 96
      %v890 = vpop.permute.xlu0 %889
      %891 = vrot.lane.b32.xlu0 %v627, 96
      %v892 = vpop.permute.xlu0 %891
      %893 = vrot.lane.b32.xlu0 %v628, 96
      %v894 = vpop.permute.xlu0 %893
      %895 = vrot.lane.b32.xlu0 %v629, 96
      %v896 = vpop.permute.xlu0 %895
      %897 = vrot.lane.b32.xlu0 %v630, 96
      %v898 = vpop.permute.xlu0 %897
      %899 = vrot.lane.b32.xlu0 %v631, 96
      %v900 = vpop.permute.xlu0 %899
      %901 = vrot.lane.b32.xlu0 %v632, 96
      %v902 = vpop.permute.xlu0 %901
      %903 = vrot.lane.b32.xlu0 %v633, 96
      %v904 = vpop.permute.xlu0 %903
      %905 = vrot.lane.b32.xlu0 %v634, 96
      %v906 = vpop.permute.xlu0 %905
      %907 = vrot.lane.b32.xlu0 %v635, 96
      %v908 = vpop.permute.xlu0 %907
      %909 = vrot.lane.b32.xlu0 %v636, 96
      %v910 = vpop.permute.xlu0 %909
      %911 = vrot.lane.b32.xlu0 %v637, 96
      %v912 = vpop.permute.xlu0 %911
      %913 = vrot.lane.b32.xlu0 %v638, 96
      %v914 = vpop.permute.xlu0 %913
      %915 = vrot.lane.b32.xlu0 %v639, 96
      %v916 = vpop.permute.xlu0 %915
      %917 = vrot.lane.b32.xlu0 %v640, 96
      %v918 = vpop.permute.xlu0 %917
      %919 = vrot.lane.b32.xlu0 %v641, 96
      %v920 = vpop.permute.xlu0 %919
      %921 = vrot.lane.b32.xlu0 %v642, 96
      %v922 = vpop.permute.xlu0 %921
      %923 = vrot.lane.b32.xlu0 %v643, 96
      %v924 = vpop.permute.xlu0 %923
      %925 = vrot.lane.b32.xlu0 %v644, 96
      %v926 = vpop.permute.xlu0 %925
      %927 = vrot.lane.b32.xlu0 %v645, 96
      %v928 = vpop.permute.xlu0 %927
      %929 = vrot.lane.b32.xlu0 %v646, 96
      %v930 = vpop.permute.xlu0 %929
      %931 = vrot.lane.b32.xlu0 %v647, 96
      %v932 = vpop.permute.xlu0 %931
      %933 = vrot.lane.b32.xlu0 %v648, 96
      %v934 = vpop.permute.xlu0 %933
      %935 = vrot.lane.b32.xlu0 %v649, 96
      %v936 = vpop.permute.xlu0 %935
      %937 = vrot.lane.b32.xlu0 %v650, 96
      %v938 = vpop.permute.xlu0 %937
      %939 = vrot.lane.b32.xlu0 %v651, 96
      %v940 = vpop.permute.xlu0 %939
      %v973 = vsel %vm652, %v878, 0.0
      %974 = vadd.xlane.f32.xlu0 %v973
      %v975 = vpop.xlane.xlu0 %974
      %v976 = vsel %vm652, %v880, 0.0
      %977 = vadd.xlane.f32.xlu0 %v976
      %v978 = vpop.xlane.xlu0 %977
      %v979 = vsel %vm652, %v882, 0.0
      %980 = vadd.xlane.f32.xlu0 %v979
      %v981 = vpop.xlane.xlu0 %980
      %v982 = vsel %vm652, %v884, 0.0
      %983 = vadd.xlane.f32.xlu0 %v982
      %v984 = vpop.xlane.xlu0 %983
      %v985 = vsel %vm652, %v886, 0.0
      %986 = vadd.xlane.f32.xlu0 %v985
      %v987 = vpop.xlane.xlu0 %986
      %v988 = vsel %vm652, %v888, 0.0
      %989 = vadd.xlane.f32.xlu0 %v988
      %v990 = vpop.xlane.xlu0 %989
      %v991 = vsel %vm652, %v890, 0.0
      %992 = vadd.xlane.f32.xlu0 %v991
      %v993 = vpop.xlane.xlu0 %992
      %v994 = vsel %vm652, %v892, 0.0
      %995 = vadd.xlane.f32.xlu0 %v994
      %v996 = vpop.xlane.xlu0 %995
      %v997 = vsel %vm652, %v894, 0.0
      %998 = vadd.xlane.f32.xlu0 %v997
      %v999 = vpop.xlane.xlu0 %998
      %v1000 = vsel %vm652, %v896, 0.0
      %1001 = vadd.xlane.f32.xlu0 %v1000
      %v1002 = vpop.xlane.xlu0 %1001
      %v1003 = vsel %vm652, %v898, 0.0
      %1004 = vadd.xlane.f32.xlu0 %v1003
      %v1005 = vpop.xlane.xlu0 %1004
      %v1006 = vsel %vm652, %v900, 0.0
      %1007 = vadd.xlane.f32.xlu0 %v1006
      %v1008 = vpop.xlane.xlu0 %1007
      %v1009 = vsel %vm652, %v902, 0.0
      %1010 = vadd.xlane.f32.xlu0 %v1009
      %v1011 = vpop.xlane.xlu0 %1010
      %v1012 = vsel %vm652, %v904, 0.0
      %1013 = vadd.xlane.f32.xlu0 %v1012
      %v1014 = vpop.xlane.xlu0 %1013
      %v1015 = vsel %vm652, %v906, 0.0
      %1016 = vadd.xlane.f32.xlu0 %v1015
      %v1017 = vpop.xlane.xlu0 %1016
      %v1018 = vsel %vm652, %v908, 0.0
      %1019 = vadd.xlane.f32.xlu0 %v1018
      %v1020 = vpop.xlane.xlu0 %1019
      %v1021 = vsel %vm652, %v910, 0.0
      %1022 = vadd.xlane.f32.xlu0 %v1021
      %v1023 = vpop.xlane.xlu0 %1022
      %v1024 = vsel %vm652, %v912, 0.0
      %1025 = vadd.xlane.f32.xlu0 %v1024
      %v1026 = vpop.xlane.xlu0 %1025
      %v1027 = vsel %vm652, %v914, 0.0
      %1028 = vadd.xlane.f32.xlu0 %v1027
      %v1029 = vpop.xlane.xlu0 %1028
      %v1030 = vsel %vm652, %v916, 0.0
      %1031 = vadd.xlane.f32.xlu0 %v1030
      %v1032 = vpop.xlane.xlu0 %1031
      %v1033 = vsel %vm652, %v918, 0.0
      %1034 = vadd.xlane.f32.xlu0 %v1033
      %v1035 = vpop.xlane.xlu0 %1034
      %v1036 = vsel %vm652, %v920, 0.0
      %1037 = vadd.xlane.f32.xlu0 %v1036
      %v1038 = vpop.xlane.xlu0 %1037
      %v1039 = vsel %vm652, %v922, 0.0
      %1040 = vadd.xlane.f32.xlu0 %v1039
      %v1041 = vpop.xlane.xlu0 %1040
      %v1042 = vsel %vm652, %v924, 0.0
      %1043 = vadd.xlane.f32.xlu0 %v1042
      %v1044 = vpop.xlane.xlu0 %1043
      %v1045 = vsel %vm652, %v926, 0.0
      %1046 = vadd.xlane.f32.xlu0 %v1045
      %v1047 = vpop.xlane.xlu0 %1046
      %v1048 = vsel %vm652, %v928, 0.0
      %1049 = vadd.xlane.f32.xlu0 %v1048
      %v1050 = vpop.xlane.xlu0 %1049
      %v1051 = vsel %vm652, %v930, 0.0
      %1052 = vadd.xlane.f32.xlu0 %v1051
      %v1053 = vpop.xlane.xlu0 %1052
      %v1054 = vsel %vm652, %v932, 0.0
      %1055 = vadd.xlane.f32.xlu0 %v1054
      %v1056 = vpop.xlane.xlu0 %1055
      %v1057 = vsel %vm652, %v934, 0.0
      %1058 = vadd.xlane.f32.xlu0 %v1057
      %v1059 = vpop.xlane.xlu0 %1058
      %v1060 = vsel %vm652, %v936, 0.0
      %1061 = vadd.xlane.f32.xlu0 %v1060
      %v1062 = vpop.xlane.xlu0 %1061
      %v1063 = vsel %vm652, %v938, 0.0
      %1064 = vadd.xlane.f32.xlu0 %v1063
      %v1065 = vpop.xlane.xlu0 %1064
      %v1066 = vsel %vm652, %v940, 0.0
      %1067 = vadd.xlane.f32.xlu0 %v1066
      %v1068 = vpop.xlane.xlu0 %1067
      %v1069 = vmax.f32 %v975, 1e-24
      %v1070 = vmax.f32 %v978, 1e-24
      %v1071 = vmax.f32 %v981, 1e-24
      %v1072 = vmax.f32 %v984, 1e-24
      %v1073 = vmax.f32 %v987, 1e-24
      %v1074 = vmax.f32 %v990, 1e-24
      %v1075 = vmax.f32 %v993, 1e-24
      %v1076 = vmax.f32 %v996, 1e-24
      %v1077 = vmax.f32 %v999, 1e-24
      %v1078 = vmax.f32 %v1002, 1e-24
      %v1079 = vmax.f32 %v1005, 1e-24
      %v1080 = vmax.f32 %v1008, 1e-24
      %v1081 = vmax.f32 %v1011, 1e-24
      %v1082 = vmax.f32 %v1014, 1e-24
      %v1083 = vmax.f32 %v1017, 1e-24
      %v1084 = vmax.f32 %v1020, 1e-24
      %v1085 = vmax.f32 %v1023, 1e-24
      %v1086 = vmax.f32 %v1026, 1e-24
      %v1087 = vmax.f32 %v1029, 1e-24
      %v1088 = vmax.f32 %v1032, 1e-24
      %v1089 = vmax.f32 %v1035, 1e-24
      %v1090 = vmax.f32 %v1038, 1e-24
      %v1091 = vmax.f32 %v1041, 1e-24
      %v1092 = vmax.f32 %v1044, 1e-24
      %v1093 = vmax.f32 %v1047, 1e-24
      %v1094 = vmax.f32 %v1050, 1e-24
      %v1095 = vmax.f32 %v1053, 1e-24
      %v1096 = vmax.f32 %v1056, 1e-24
      %v1097 = vmax.f32 %v1059, 1e-24
      %v1098 = vmax.f32 %v1062, 1e-24
      %v1099 = vmax.f32 %v1065, 1e-24
      %v1100 = vmax.f32 %v1068, 1e-24
      %v1101 = vrsqrt.pop %v1069
      %v1102 = vrsqrt.pop %v1070
      %v1103 = vrsqrt.pop %v1071
      %v1104 = vrsqrt.pop %v1072
      %v1105 = vrsqrt.pop %v1073
      %v1106 = vrsqrt.pop %v1074
      %v1107 = vrsqrt.pop %v1075
      %v1108 = vrsqrt.pop %v1076
      %v1109 = vrsqrt.pop %v1077
      %v1110 = vrsqrt.pop %v1078
      %v1111 = vrsqrt.pop %v1079
      %v1112 = vrsqrt.pop %v1080
      %v1113 = vrsqrt.pop %v1081
      %v1114 = vrsqrt.pop %v1082
      %v1115 = vrsqrt.pop %v1083
      %v1116 = vrsqrt.pop %v1084
      %v1117 = vrsqrt.pop %v1085
      %v1118 = vrsqrt.pop %v1086
      %v1119 = vrsqrt.pop %v1087
      %v1120 = vrsqrt.pop %v1088
      %v1121 = vrsqrt.pop %v1089
      %v1122 = vrsqrt.pop %v1090
      %v1123 = vrsqrt.pop %v1091
      %v1124 = vrsqrt.pop %v1092
      %v1125 = vrsqrt.pop %v1093
      %v1126 = vrsqrt.pop %v1094
      %v1127 = vrsqrt.pop %v1095
      %v1128 = vrsqrt.pop %v1096
      %v1129 = vrsqrt.pop %v1097
      %v1130 = vrsqrt.pop %v1098
      %v1131 = vrsqrt.pop %v1099
      %v1132 = vrsqrt.pop %v1100
      %v1133 = vmul.f32 %v462, %v1101
      %v1134 = vmul.f32 %v467, %v1102
      %v1135 = vmul.f32 %v472, %v1103
      %v1136 = vmul.f32 %v477, %v1104
      %v1137 = vmul.f32 %v482, %v1105
      %v1138 = vmul.f32 %v487, %v1106
      %v1139 = vmul.f32 %v492, %v1107
      %v1140 = vmul.f32 %v497, %v1108
      %v1141 = vmul.f32 %v502, %v1109
      %v1142 = vmul.f32 %v507, %v1110
      %v1143 = vmul.f32 %v512, %v1111
      %v1144 = vmul.f32 %v517, %v1112
      %v1145 = vmul.f32 %v522, %v1113
      %v1146 = vmul.f32 %v527, %v1114
      %v1147 = vmul.f32 %v532, %v1115
      %v1148 = vmul.f32 %v537, %v1116
      %v1149 = vmul.f32 %v542, %v1117
      %v1150 = vmul.f32 %v547, %v1118
      %v1151 = vmul.f32 %v552, %v1119
      %v1152 = vmul.f32 %v557, %v1120
      %v1153 = vmul.f32 %v562, %v1121
      %v1154 = vmul.f32 %v567, %v1122
      %v1155 = vmul.f32 %v572, %v1123
      %v1156 = vmul.f32 %v577, %v1124
      %v1157 = vmul.f32 %v582, %v1125
      %v1158 = vmul.f32 %v587, %v1126
      %v1159 = vmul.f32 %v592, %v1127
      %v1160 = vmul.f32 %v597, %v1128
      %v1161 = vmul.f32 %v602, %v1129
      %v1162 = vmul.f32 %v607, %v1130
      %v1163 = vmul.f32 %v612, %v1131
      %v1164 = vmul.f32 %v617, %v1132
      %1165 = vst.msk [vmem:[%s249] sm:$0xff] %vm652, %v813
      %1166 = vst.msk [vmem:[%s249 + $0x8] sm:$0xff] %vm652, %v814
      %1167 = vst.msk [vmem:[%s249 + $0x10] sm:$0xff] %vm652, %v815
      %1168 = vst.msk [vmem:[%s249 + $0x18] sm:$0xff] %vm652, %v816
      %1169 = vst.msk [vmem:[%s249 + $0x20] sm:$0xff] %vm652, %v817
      %1170 = vst.msk [vmem:[%s249 + $0x28] sm:$0xff] %vm652, %v818
      %1171 = vst.msk [vmem:[%s249 + $0x30] sm:$0xff] %vm652, %v819
      %1172 = vst.msk [vmem:[%s249 + $0x38] sm:$0xff] %vm652, %v820
      %1173 = vst.msk [vmem:[%s249 + $0x40] sm:$0xff] %vm652, %v821
      %1174 = vst.msk [vmem:[%s249 + $0x48] sm:$0xff] %vm652, %v822
      %1175 = vst.msk [vmem:[%s249 + $0x50] sm:$0xff] %vm652, %v823
      %1176 = vst.msk [vmem:[%s249 + $0x58] sm:$0xff] %vm652, %v824
      %1177 = vst.msk [vmem:[%s249 + $0x60] sm:$0xff] %vm652, %v825
      %1178 = vst.msk [vmem:[%s249 + $0x68] sm:$0xff] %vm652, %v826
      %1179 = vst.msk [vmem:[%s249 + $0x70] sm:$0xff] %vm652, %v827
      %1180 = vst.msk [vmem:[%s249 + $0x78] sm:$0xff] %vm652, %v828
      %1181 = vst.msk [vmem:[%s249 + $0x80] sm:$0xff] %vm652, %v829
      %1182 = vst.msk [vmem:[%s249 + $0x88] sm:$0xff] %vm652, %v830
      %1183 = vst.msk [vmem:[%s249 + $0x90] sm:$0xff] %vm652, %v831
      %1184 = vst.msk [vmem:[%s249 + $0x98] sm:$0xff] %vm652, %v832
      %1185 = vst.msk [vmem:[%s249 + $0xa0] sm:$0xff] %vm652, %v833
      %1186 = vst.msk [vmem:[%s249 + $0xa8] sm:$0xff] %vm652, %v834
      %1187 = vst.msk [vmem:[%s249 + $0xb0] sm:$0xff] %vm652, %v835
      %1188 = vst.msk [vmem:[%s249 + $0xb8] sm:$0xff] %vm652, %v836
      %1189 = vst.msk [vmem:[%s249 + $0xc0] sm:$0xff] %vm652, %v837
      %1190 = vst.msk [vmem:[%s249 + $0xc8] sm:$0xff] %vm652, %v838
      %1191 = vst.msk [vmem:[%s249 + $0xd0] sm:$0xff] %vm652, %v839
      %1192 = vst.msk [vmem:[%s249 + $0xd8] sm:$0xff] %vm652, %v840
      %1193 = vst.msk [vmem:[%s249 + $0xe0] sm:$0xff] %vm652, %v841
      %1194 = vst.msk [vmem:[%s249 + $0xe8] sm:$0xff] %vm652, %v842
      %1195 = vst.msk [vmem:[%s249 + $0xf0] sm:$0xff] %vm652, %v843
      %1196 = vst.msk [vmem:[%s249 + $0xf8] sm:$0xff] %vm652, %v844
      %v1197 = vld [vmem:[%s239] sm:$0xff]
      %v1198 = vld [vmem:[%s239 + $0x8] sm:$0xff]
      %v1199 = vld [vmem:[%s239 + $0x10] sm:$0xff]
      %v1200 = vld [vmem:[%s239 + $0x18] sm:$0xff]
      %1233 = vrot.lane.b32.xlu0 %v1133, 96
      %v1234 = vpop.permute.xlu0 %1233
      %1235 = vrot.lane.b32.xlu0 %v1134, 96
      %v1236 = vpop.permute.xlu0 %1235
      %1237 = vrot.lane.b32.xlu0 %v1135, 96
      %v1238 = vpop.permute.xlu0 %1237
      %1239 = vrot.lane.b32.xlu0 %v1136, 96
      %v1240 = vpop.permute.xlu0 %1239
      %1241 = vrot.lane.b32.xlu0 %v1137, 96
      %v1242 = vpop.permute.xlu0 %1241
      %1243 = vrot.lane.b32.xlu0 %v1138, 96
      %v1244 = vpop.permute.xlu0 %1243
      %1245 = vrot.lane.b32.xlu0 %v1139, 96
      %v1246 = vpop.permute.xlu0 %1245
      %1247 = vrot.lane.b32.xlu0 %v1140, 96
      %v1248 = vpop.permute.xlu0 %1247
      %1249 = vrot.lane.b32.xlu0 %v1141, 96
      %v1250 = vpop.permute.xlu0 %1249
      %1251 = vrot.lane.b32.xlu0 %v1142, 96
      %v1252 = vpop.permute.xlu0 %1251
      %1253 = vrot.lane.b32.xlu0 %v1143, 96
      %v1254 = vpop.permute.xlu0 %1253
      %1255 = vrot.lane.b32.xlu0 %v1144, 96
      %v1256 = vpop.permute.xlu0 %1255
      %1257 = vrot.lane.b32.xlu0 %v1145, 96
      %v1258 = vpop.permute.xlu0 %1257
      %1259 = vrot.lane.b32.xlu0 %v1146, 96
      %v1260 = vpop.permute.xlu0 %1259
      %1261 = vrot.lane.b32.xlu0 %v1147, 96
      %v1262 = vpop.permute.xlu0 %1261
      %1263 = vrot.lane.b32.xlu0 %v1148, 96
      %v1264 = vpop.permute.xlu0 %1263
      %1265 = vrot.lane.b32.xlu0 %v1149, 96
      %v1266 = vpop.permute.xlu0 %1265
      %1267 = vrot.lane.b32.xlu0 %v1150, 96
      %v1268 = vpop.permute.xlu0 %1267
      %1269 = vrot.lane.b32.xlu0 %v1151, 96
      %v1270 = vpop.permute.xlu0 %1269
      %1271 = vrot.lane.b32.xlu0 %v1152, 96
      %v1272 = vpop.permute.xlu0 %1271
      %1273 = vrot.lane.b32.xlu0 %v1153, 96
      %v1274 = vpop.permute.xlu0 %1273
      %1275 = vrot.lane.b32.xlu0 %v1154, 96
      %v1276 = vpop.permute.xlu0 %1275
      %1277 = vrot.lane.b32.xlu0 %v1155, 96
      %v1278 = vpop.permute.xlu0 %1277
      %1279 = vrot.lane.b32.xlu0 %v1156, 96
      %v1280 = vpop.permute.xlu0 %1279
      %1281 = vrot.lane.b32.xlu0 %v1157, 96
      %v1282 = vpop.permute.xlu0 %1281
      %1283 = vrot.lane.b32.xlu0 %v1158, 96
      %v1284 = vpop.permute.xlu0 %1283
      %1285 = vrot.lane.b32.xlu0 %v1159, 96
      %v1286 = vpop.permute.xlu0 %1285
      %1287 = vrot.lane.b32.xlu0 %v1160, 96
      %v1288 = vpop.permute.xlu0 %1287
      %1289 = vrot.lane.b32.xlu0 %v1161, 96
      %v1290 = vpop.permute.xlu0 %1289
      %1291 = vrot.lane.b32.xlu0 %v1162, 96
      %v1292 = vpop.permute.xlu0 %1291
      %1293 = vrot.lane.b32.xlu0 %v1163, 96
      %v1294 = vpop.permute.xlu0 %1293
      %1295 = vrot.lane.b32.xlu0 %v1164, 96
      %v1296 = vpop.permute.xlu0 %1295
      %1329 = vxpose.xlu0.b32.start [1/16] %v1234, 128
      %1330 = vxpose.xlu0.b32.cont [2/16] %v1236, 128
      %1331 = vxpose.xlu0.b32.cont [3/16] %v1238, 128
      %1332 = vxpose.xlu0.b32.cont [4/16] %v1240, 128
      %1333 = vxpose.xlu0.b32.cont [5/16] %v1242, 128
      %1334 = vxpose.xlu0.b32.cont [6/16] %v1244, 128
      %1335 = vxpose.xlu0.b32.cont [7/16] %v1246, 128
      %1336 = vxpose.xlu0.b32.cont [8/16] %v1248, 128
      %1337 = vxpose.xlu0.b32.cont [9/16] %v1250, 128
      %1338 = vxpose.xlu0.b32.cont [10/16] %v1252, 128
      %1339 = vxpose.xlu0.b32.cont [11/16] %v1254, 128
      %1340 = vxpose.xlu0.b32.cont [12/16] %v1256, 128
      %1341 = vxpose.xlu0.b32.cont [13/16] %v1258, 128
      %1342 = vxpose.xlu0.b32.cont [14/16] %v1260, 128
      %1343 = vxpose.xlu0.b32.cont [15/16] %v1262, 128
      %1344 = vxpose.xlu0.b32.end [16/16] %v1264, 128
      %v1345 = vpop.trf.xlu0
      %v1346 = vpop.trf.xlu0
      %v1347 = vpop.trf.xlu0
      %v1348 = vpop.trf.xlu0
      %v1349 = vpop.trf.xlu0
      %v1350 = vpop.trf.xlu0
      %v1351 = vpop.trf.xlu0
      %v1352 = vpop.trf.xlu0
      %v1353 = vpop.trf.xlu0
      %v1354 = vpop.trf.xlu0
      %v1355 = vpop.trf.xlu0
      %v1356 = vpop.trf.xlu0
      %v1357 = vpop.trf.xlu0
      %v1358 = vpop.trf.xlu0
      %v1359 = vpop.trf.xlu0
      %v1360 = vpop.trf.xlu0
      %1361 = vxpose.xlu0.b32.start [1/16] %v1266, 128
      %1362 = vxpose.xlu0.b32.cont [2/16] %v1268, 128
      %1363 = vxpose.xlu0.b32.cont [3/16] %v1270, 128
      %1364 = vxpose.xlu0.b32.cont [4/16] %v1272, 128
      %1365 = vxpose.xlu0.b32.cont [5/16] %v1274, 128
      %1366 = vxpose.xlu0.b32.cont [6/16] %v1276, 128
      %1367 = vxpose.xlu0.b32.cont [7/16] %v1278, 128
      %1368 = vxpose.xlu0.b32.cont [8/16] %v1280, 128
      %1369 = vxpose.xlu0.b32.cont [9/16] %v1282, 128
      %1370 = vxpose.xlu0.b32.cont [10/16] %v1284, 128
      %1371 = vxpose.xlu0.b32.cont [11/16] %v1286, 128
      %1372 = vxpose.xlu0.b32.cont [12/16] %v1288, 128
      %1373 = vxpose.xlu0.b32.cont [13/16] %v1290, 128
      %1374 = vxpose.xlu0.b32.cont [14/16] %v1292, 128
      %1375 = vxpose.xlu0.b32.cont [15/16] %v1294, 128
      %1376 = vxpose.xlu0.b32.end [16/16] %v1296, 128
      %v1377 = vpop.trf.xlu0
      %v1378 = vpop.trf.xlu0
      %v1379 = vpop.trf.xlu0
      %v1380 = vpop.trf.xlu0
      %v1381 = vpop.trf.xlu0
      %v1382 = vpop.trf.xlu0
      %v1383 = vpop.trf.xlu0
      %v1384 = vpop.trf.xlu0
      %v1385 = vpop.trf.xlu0
      %v1386 = vpop.trf.xlu0
      %v1387 = vpop.trf.xlu0
      %v1388 = vpop.trf.xlu0
      %v1389 = vpop.trf.xlu0
      %v1390 = vpop.trf.xlu0
      %v1391 = vpop.trf.xlu0
      %v1392 = vpop.trf.xlu0
      %1425 = vrot.lane.b32.xlu0 %v462, 64
      %v1426 = vpop.permute.xlu0 %1425
      %1427 = vrot.lane.b32.xlu0 %v467, 64
      %v1428 = vpop.permute.xlu0 %1427
      %1429 = vrot.lane.b32.xlu0 %v472, 64
      %v1430 = vpop.permute.xlu0 %1429
      %1431 = vrot.lane.b32.xlu0 %v477, 64
      %v1432 = vpop.permute.xlu0 %1431
      %1433 = vrot.lane.b32.xlu0 %v482, 64
      %v1434 = vpop.permute.xlu0 %1433
      %1435 = vrot.lane.b32.xlu0 %v487, 64
      %v1436 = vpop.permute.xlu0 %1435
      %1437 = vrot.lane.b32.xlu0 %v492, 64
      %v1438 = vpop.permute.xlu0 %1437
      %1439 = vrot.lane.b32.xlu0 %v497, 64
      %v1440 = vpop.permute.xlu0 %1439
      %1441 = vrot.lane.b32.xlu0 %v502, 64
      %v1442 = vpop.permute.xlu0 %1441
      %1443 = vrot.lane.b32.xlu0 %v507, 64
      %v1444 = vpop.permute.xlu0 %1443
      %1445 = vrot.lane.b32.xlu0 %v512, 64
      %v1446 = vpop.permute.xlu0 %1445
      %1447 = vrot.lane.b32.xlu0 %v517, 64
      %v1448 = vpop.permute.xlu0 %1447
      %1449 = vrot.lane.b32.xlu0 %v522, 64
      %v1450 = vpop.permute.xlu0 %1449
      %1451 = vrot.lane.b32.xlu0 %v527, 64
      %v1452 = vpop.permute.xlu0 %1451
      %1453 = vrot.lane.b32.xlu0 %v532, 64
      %v1454 = vpop.permute.xlu0 %1453
      %1455 = vrot.lane.b32.xlu0 %v537, 64
      %v1456 = vpop.permute.xlu0 %1455
      %1457 = vrot.lane.b32.xlu0 %v542, 64
      %v1458 = vpop.permute.xlu0 %1457
      %1459 = vrot.lane.b32.xlu0 %v547, 64
      %v1460 = vpop.permute.xlu0 %1459
      %1461 = vrot.lane.b32.xlu0 %v552, 64
      %v1462 = vpop.permute.xlu0 %1461
      %1463 = vrot.lane.b32.xlu0 %v557, 64
      %v1464 = vpop.permute.xlu0 %1463
      %1465 = vrot.lane.b32.xlu0 %v562, 64
      %v1466 = vpop.permute.xlu0 %1465
      %1467 = vrot.lane.b32.xlu0 %v567, 64
      %v1468 = vpop.permute.xlu0 %1467
      %1469 = vrot.lane.b32.xlu0 %v572, 64
      %v1470 = vpop.permute.xlu0 %1469
      %1471 = vrot.lane.b32.xlu0 %v577, 64
      %v1472 = vpop.permute.xlu0 %1471
      %1473 = vrot.lane.b32.xlu0 %v582, 64
      %v1474 = vpop.permute.xlu0 %1473
      %1475 = vrot.lane.b32.xlu0 %v587, 64
      %v1476 = vpop.permute.xlu0 %1475
      %1477 = vrot.lane.b32.xlu0 %v592, 64
      %v1478 = vpop.permute.xlu0 %1477
      %1479 = vrot.lane.b32.xlu0 %v597, 64
      %v1480 = vpop.permute.xlu0 %1479
      %1481 = vrot.lane.b32.xlu0 %v602, 64
      %v1482 = vpop.permute.xlu0 %1481
      %1483 = vrot.lane.b32.xlu0 %v607, 64
      %v1484 = vpop.permute.xlu0 %1483
      %1485 = vrot.lane.b32.xlu0 %v612, 64
      %v1486 = vpop.permute.xlu0 %1485
      %1487 = vrot.lane.b32.xlu0 %v617, 64
      %v1488 = vpop.permute.xlu0 %1487
      %1521 = vmatprep.subr.mxu0 0.0
      %1522 = vmatpush1.msra.mxu0 %v1426
      %1523 = vmatprep.subr.mxu0 0.0
      %1524 = vmatpush1.msra.mxu0 %v1428
      %1525 = vmatprep.subr.mxu0 0.0
      %1526 = vmatpush1.msra.mxu0 %v1430
      %1527 = vmatprep.subr.mxu0 0.0
      %1528 = vmatpush1.msra.mxu0 %v1432
      %1529 = vmatprep.subr.mxu0 0.0
      %1530 = vmatpush1.msra.mxu0 %v1434
      %1531 = vmatprep.subr.mxu0 0.0
      %1532 = vmatpush1.msra.mxu0 %v1436
      %1533 = vmatprep.subr.mxu0 0.0
      %1534 = vmatpush1.msra.mxu0 %v1438
      %1535 = vmatprep.subr.mxu0 0.0
      %1536 = vmatpush1.msra.mxu0 %v1440
      %1537 = vmatprep.subr.mxu0 0.0
      %1538 = vmatpush1.msra.mxu0 %v1442
      %1539 = vmatprep.subr.mxu0 0.0
      %1540 = vmatpush1.msra.mxu0 %v1444
      %1541 = vmatprep.subr.mxu0 0.0
      %1542 = vmatpush1.msra.mxu0 %v1446
      %1543 = vmatprep.subr.mxu0 0.0
      %1544 = vmatpush1.msra.mxu0 %v1448
      %1545 = vmatprep.subr.mxu0 0.0
      %1546 = vmatpush1.msra.mxu0 %v1450
      %1547 = vmatprep.subr.mxu0 0.0
      %1548 = vmatpush1.msra.mxu0 %v1452
      %1549 = vmatprep.subr.mxu0 0.0
      %1550 = vmatpush1.msra.mxu0 %v1454
      %1551 = vmatprep.subr.mxu0 0.0
      %1552 = vmatpush1.msra.mxu0 %v1456
      %1553 = vmatprep.subr.mxu0 0.0
      %1554 = vmatpush1.msra.mxu0 %v1458
      %1555 = vmatprep.subr.mxu0 0.0
      %1556 = vmatpush1.msra.mxu0 %v1460
      %1557 = vmatprep.subr.mxu0 0.0
      %1558 = vmatpush1.msra.mxu0 %v1462
      %1559 = vmatprep.subr.mxu0 0.0
      %1560 = vmatpush1.msra.mxu0 %v1464
      %1561 = vmatprep.subr.mxu0 0.0
      %1562 = vmatpush1.msra.mxu0 %v1466
      %1563 = vmatprep.subr.mxu0 0.0
      %1564 = vmatpush1.msra.mxu0 %v1468
      %1565 = vmatprep.subr.mxu0 0.0
      %1566 = vmatpush1.msra.mxu0 %v1470
      %1567 = vmatprep.subr.mxu0 0.0
      %1568 = vmatpush1.msra.mxu0 %v1472
      %1569 = vmatprep.subr.mxu0 0.0
      %1570 = vmatpush1.msra.mxu0 %v1474
      %1571 = vmatprep.subr.mxu0 0.0
      %1572 = vmatpush1.msra.mxu0 %v1476
      %1573 = vmatprep.subr.mxu0 0.0
      %1574 = vmatpush1.msra.mxu0 %v1478
      %1575 = vmatprep.subr.mxu0 0.0
      %1576 = vmatpush1.msra.mxu0 %v1480
      %1577 = vmatprep.subr.mxu0 0.0
      %1578 = vmatpush1.msra.mxu0 %v1482
      %1579 = vmatprep.subr.mxu0 0.0
      %1580 = vmatpush1.msra.mxu0 %v1484
      %1581 = vmatprep.subr.mxu0 0.0
      %1582 = vmatpush1.msra.mxu0 %v1486
      %1583 = vmatprep.subr.mxu0 0.0
      %1584 = vmatpush1.msra.mxu0 %v1488
      %1585 = vmatprep.mubr.f32.mxu0 %v1377
      %1586 = vmatmul.mubr.f32.gmra.mrb[0].mxu0 %v1345
      %v1587 = vpop.f32.mrb[0].mxu0
      %v1588 = vadd.f32 0.0, %v1587
      %v1589 = vpop.f32.mrb[0].mxu0
      %1590 = vmatprep.mubr.f32.mxu0 %v1378
      %1591 = vmatmul.mubr.f32.gmra.mrb[0].mxu0 %v1346
      %v1592 = vpop.f32.mrb[0].mxu0
      %v1593 = vadd.f32 0.0, %v1592
      %v1594 = vpop.f32.mrb[0].mxu0
      %1595 = vmatprep.mubr.f32.mxu0 %v1379
      %1596 = vmatmul.mubr.f32.gmra.mrb[0].mxu0 %v1347
      %v1597 = vpop.f32.mrb[0].mxu0
      %v1598 = vadd.f32 0.0, %v1597
      %v1599 = vpop.f32.mrb[0].mxu0
      %1600 = vmatprep.mubr.f32.mxu0 %v1380
      %1601 = vmatmul.mubr.f32.gmra.mrb[0].mxu0 %v1348
      %v1602 = vpop.f32.mrb[0].mxu0
      %v1603 = vadd.f32 0.0, %v1602
      %v1604 = vpop.f32.mrb[0].mxu0
      %1605 = vdwg.mxu0
      %v1606 = vadd.f32 %v1197, %v1588
      %v1607 = vadd.f32 %v1198, %v1593
      %v1608 = vadd.f32 %v1199, %v1598
      %v1609 = vadd.f32 %v1200, %v1603
      %1610 = vst.msk [vmem:[%s239] sm:$0xff] %vm294, %v1606
      %1611 = vst.msk [vmem:[%s239 + $0x8] sm:$0xff] %vm294, %v1607
      %1612 = vst.msk [vmem:[%s239 + $0x10] sm:$0xff] %vm294, %v1608
      %1613 = vst.msk [vmem:[%s239 + $0x18] sm:$0xff] %vm294, %v1609
      %p1614 = scmp.lt.s32.totalorder %s20, 1
      %s1615 = scalar_select %p1614, %s20, 1
      %p1616 = scmp.lt.s32.totalorder %s21, 0
      %s1617 = scalar_select %p1616, %s21, 0
      %s1618 = smul.addr %s1617, 4
      %s1619 = smul.addr %s1615, 4
      %s1620 = sadd.s32 %s1618, %s1619
      %s1621 = smul.addr %s1620, 8
      %s1622 = scalar_lea.vmem %s2, %s1621
      %s1623 = sadd.s32 %s21, %s22
      %s1624 = smul.u32 32, %s1623
      %p1625 = scmp.lt.s32.totalorder %s20, 1
      %s1626 = scalar_select %p1625, %s20, 1
      %p1627 = scmp.lt.s32.totalorder %s1624, 31
      %s1628 = scalar_select %p1627, %s1624, 31
      %s1629 = smul.addr %s1626, 32
      %s1630 = sadd.s32 %s1628, %s1629
      %s1631 = smul.addr %s1630, 8
      %s1632 = scalar_lea.vmem %s3, %s1631
      // Predicated region
      $region33: #{tpu_custom_call.1} parent=27 // pred_check
        %p1633 = pneg %p105
      $region34: #{tpu_custom_call.1} parent=27 // pred_check_branch
        %1635 = sbr.rel (%p1633) target = $region36
      $region35: #{tpu_custom_call.1} parent=27 // pred_region
        _
      $region36: #{tpu_custom_call.1} parent=27 // pred_fallthru
        _
      // Predicated region
      $region37: #{tpu_custom_call.1} parent=27 // pred_check
        %p1636 = pneg %p135
      $region38: #{tpu_custom_call.1} parent=27 // pred_check_branch
        %1638 = sbr.rel (%p1636) target = $region40
      $region39: #{tpu_custom_call.1} parent=27 // pred_region
        %s1639 = sadd.s32 %s21, %s22
        %s1640 = smul.u32 32, %s1639
      $region40: #{tpu_custom_call.1} parent=27 // pred_fallthru
        _
    $region28: #{tpu_custom_call.1} parent=5 // pred_fallthru
      _
    %p1641 = scmp.le.s32.totalorder 2, %s10
    // Predicated region
    $region41: #{tpu_custom_call.1} parent=5 // pred_check
      %p1642 = pneg %p1641
    $region42: #{tpu_custom_call.1} parent=5 // pred_check_branch
      %1644 = sbr.rel (%p1642) target = $region44
    $region43: #{tpu_custom_call.1} parent=5 // pred_region
      %s1645 = ssub.s32 %s10, 2
      // Predicated region
      $region45: #{tpu_custom_call.1} parent=43 // pred_check
        %p1646 = pneg %p111
      $region46: #{tpu_custom_call.1} parent=43 // pred_check_branch
        %1648 = sbr.rel (%p1646) target = $region48
      $region47: #{tpu_custom_call.1} parent=43 // pred_region
        %p1649 = scmp.lt.s32.totalorder %s23, 1
        %s1650 = scalar_select %p1649, %s23, 1
        %p1651 = scmp.lt.s32.totalorder %s24, 0
        %s1652 = scalar_select %p1651, %s24, 0
        %s1653 = smul.addr %s1652, 4
        %s1654 = smul.addr %s1650, 4
        %s1655 = sadd.s32 %s1653, %s1654
        %s1656 = smul.addr %s1655, 8
        %s1657 = scalar_lea.vmem %s2, %s1656
      $region48: #{tpu_custom_call.1} parent=43 // pred_fallthru
        _
      // Predicated region
      $region49: #{tpu_custom_call.1} parent=43 // pred_check
        %p1658 = pneg %p141
      $region50: #{tpu_custom_call.1} parent=43 // pred_check_branch
        %1660 = sbr.rel (%p1658) target = $region52
      $region51: #{tpu_custom_call.1} parent=43 // pred_region
        %s1661 = sadd.s32 %s24, %s25
        %s1662 = smul.u32 32, %s1661
        %p1663 = scmp.lt.s32.totalorder %s23, 1
        %s1664 = scalar_select %p1663, %s23, 1
        %p1665 = scmp.lt.s32.totalorder %s1662, 31
        %s1666 = scalar_select %p1665, %s1662, 31
        %s1667 = smul.addr %s1664, 32
        %s1668 = sadd.s32 %s1666, %s1667
        %s1669 = smul.addr %s1668, 8
        %s1670 = scalar_lea.vmem %s3, %s1669
      $region52: #{tpu_custom_call.1} parent=43 // pred_fallthru
        _
    $region44: #{tpu_custom_call.1} parent=5 // pred_fallthru
      _
  $region6: #{tpu_custom_call.1} parent=0 // loop_footer
    %s14 = sadd.s32 1, %s10
  $region7: #{tpu_custom_call.1} parent=0 // loop_footer_branch
    %9 = sbr.rel target = $region3
  $region8: #{tpu_custom_call.1} parent=0 // loop_exit
    _

</llo_original>
